<compile_context>
chip_gen: v7x
topology: tpu7x:2x2x1
jax: 0.10.0
libtpu: 0.0.40
codegen_flags: <defaults>
</compile_context>

<pallas_src>
import numpy as np
import jax
import jax.numpy as jnp
from jax.experimental import pallas as pl
from jax.experimental.pallas import tpu as pltpu


def _round_up(x, m):
    return (x + m - 1) // m * m


def _pad_lanes(x):
    # Lane-dim padding: >=128 (vreg lanes); multiples of 256 once past a single
    # MXU tile so v6e/v7x 256-wide MXU passes stay fully filled.
    return _round_up(x, 256) if x > 128 else _round_up(x, 128)


# ----------------------------------------------------------------------------
# Pallas kernel: both matmuls, bias, ReLU, in-kernel branch summation.
# grid = (row_tile r, branch b, k_tile k); r parallel, b/k serial reductions.
# ----------------------------------------------------------------------------
def _mw_msg3d_kernel(slab_ref, x_ref, m1_ref, b1_ref, m2_ref, b2_ref,
                     out_ref, h_acc, o_acc):
    del slab_ref  # only consumed by the x index_map (branch -> shared x slab)
    b = pl.program_id(1)
    k = pl.program_id(2)

    @pl.when(k == 0)
    def _():
        h_acc[...] = jnp.zeros_like(h_acc)

    # K-tiled first matmul (multi-scale graph aggregation + 1x1 conv + BN1).
    h_acc[...] += jnp.dot(x_ref[...], m1_ref[...],
                          preferred_element_type=jnp.float32)

    @pl.when(k == pl.num_programs(2) - 1)
    def _():
        h = jnp.maximum(h_acc[...] + b1_ref[...], 0.0).astype(m2_ref.dtype)
        y = (jnp.dot(h, m2_ref[...], preferred_element_type=jnp.float32)
             + b2_ref[...])

        # In-kernel branch summation in f32; single bf16 writeback per row tile.
        @pl.when(b == 0)
        def _():
            o_acc[...] = y

        @pl.when(b != 0)
        def _():
            o_acc[...] += y

        @pl.when(b == pl.num_programs(1) - 1)
        def _():
            out_ref[...] = o_acc[...].astype(out_ref.dtype)


# ----------------------------------------------------------------------------
# Graph construction (numpy, parameter-side preprocessing)
# ----------------------------------------------------------------------------
def k_adjacency(A, k, with_self=True):
    I = np.eye(len(A), dtype=A.dtype)
    if k == 0:
        return I
    Ak = (np.minimum(np.linalg.matrix_power(A + I, k), 1)
          - np.minimum(np.linalg.matrix_power(A + I, k - 1), 1))
    if with_self:
        Ak = Ak + I
    return Ak


def normalize_adjacency(A):
    deg = A.sum(-1)
    d_inv_sqrt = np.zeros_like(deg)
    nz = deg > 0
    d_inv_sqrt[nz] = deg[nz] ** -0.5
    D = np.diag(d_inv_sqrt)
    return (D @ A @ D).astype(np.float32)


def build_spatial_temporal_scales(A_binary, num_scales, window_size):
    Vj = len(A_binary)
    A_with_I = A_binary.astype(np.float32) + np.eye(Vj, dtype=np.float32)
    A_large = np.tile(A_with_I, (window_size, window_size))      # (W*V, W*V)
    scales = [normalize_adjacency(k_adjacency(A_large, k, with_self=True))
              for k in range(num_scales)]
    return np.concatenate(scales, axis=0)                        # (S*W*V, W*V)


# ----------------------------------------------------------------------------
# UnfoldTemporalWindows (glue, matches nn.Unfold((W,1), dilation, pad, stride))
# ----------------------------------------------------------------------------
def unfold_temporal_windows(x, window, stride, dilation):
    # x: (N, C, T, V) -> (N, T_out, C, window*V) with inner index = w*V + v
    N, C, T, V = x.shape
    pad = (window + (window - 1) * (dilation - 1) - 1) // 2
    xp = jnp.pad(x, ((0, 0), (0, 0), (pad, pad), (0, 0)))
    T_out = (T + 2 * pad - dilation * (window - 1) - 1) // stride + 1
    wins = [xp[:, :, w * dilation: w * dilation + stride * (T_out - 1) + 1: stride, :]
            for w in range(window)]
    xw = jnp.stack(wins, axis=3)                 # (N, C, T_out, W, V)
    xw = jnp.transpose(xw, (0, 2, 1, 3, 4))      # (N, T_out, C, W, V)
    return xw.reshape(N, T_out, C, window * V)


# ----------------------------------------------------------------------------
# Parameter init (deterministic, mirrors MSG3D.__init__ shapes) and folding
# ----------------------------------------------------------------------------
def init_branch_params(key, c_in, c_out, num_scales, num_joints, window, stride, dilation):
    # embed_factor == 1 and c_in != 3  =>  in1x1 = Identity, embed channels E = c_in
    E = c_in
    Vw = window * num_joints
    ks = jax.random.split(key, 5)
    return dict(
        window=window, stride=stride, dilation=dilation, embed=E,
        A_res=jax.random.uniform(ks[0], (num_scales * Vw, Vw), jnp.float32, -1e-6, 1e-6),
        W1=jax.random.normal(ks[1], (E, num_scales * c_in), jnp.float32)
           / np.sqrt(num_scales * c_in),                       # MLP 1x1 conv
        b1=0.1 * jax.random.normal(ks[2], (E,), jnp.float32),
        W3=jax.random.normal(ks[3], (c_out, E, window), jnp.float32)
           / np.sqrt(E * window),                              # Conv3d (1,W,1)
        b3=0.1 * jax.random.normal(ks[4], (c_out,), jnp.float32),
        # BatchNorm defaults: (gamma, beta, running_mean, running_var)
        bn1=(jnp.ones((E,), jnp.float32), jnp.zeros((E,), jnp.float32),
             jnp.zeros((E,), jnp.float32), jnp.ones((E,), jnp.float32)),
        bn2=(jnp.ones((c_out,), jnp.float32), jnp.zeros((c_out,), jnp.float32),
             jnp.zeros((c_out,), jnp.float32), jnp.ones((c_out,), jnp.float32)),
    )


def fold_branch(A_scales, prm, c_in, c_out, num_scales, num_joints, eps=1e-5):
    W, E = prm['window'], prm['embed']
    Vw = W * num_joints
    g1, be1, mu1, var1 = prm['bn1']
    s1 = g1 / jnp.sqrt(var1 + eps)
    W1_eff = (prm['W1'] * s1[:, None]).reshape(E, num_scales, c_in)
    b1_eff = s1 * prm['b1'] + be1 - s1 * mu1
    A = (jnp.asarray(A_scales) + prm['A_res']).reshape(num_scales, Vw, Vw)
    # M1 so that  h[t, e*Vw+v'] = sum_{s,c,u} W1[e,s,c] * A[s,v',u] * x[t,c,u]
    M1 = jnp.einsum('esc,svu->evcu', W1_eff, A).reshape(E * Vw, c_in * Vw).T
    b1_full = jnp.repeat(b1_eff, Vw)[None, :]                    # (1, E*Vw)

    g2, be2, mu2, var2 = prm['bn2']
    s2 = g2 / jnp.sqrt(var2 + eps)
    W3_eff = prm['W3'] * s2[:, None, None]                       # (O, E, W)
    b3_eff = s2 * prm['b3'] + be2 - s2 * mu2
    # Block-diagonal (over V) matrix so the window-collapsing Conv3d is a
    # single lane-dense 2-D matmul:  M2[(e,w,v), (v,o)] = W3_eff[o,e,w]
    eyeV = jnp.eye(num_joints, dtype=jnp.float32)
    M2 = jnp.einsum('oew,vz->ewvzo', W3_eff, eyeV).reshape(E * Vw, num_joints * c_out)
    b2_full = jnp.tile(b3_eff, num_joints)[None, :]              # (1, V*O)
    return M1, b1_full, M2, b2_full


# ----------------------------------------------------------------------------
# Wrapper: MultiWindowMSG3D forward
# ----------------------------------------------------------------------------
def multi_window_msg3d_forward(x, A_scales_list, branch_params, c_out):
    # x: (N, C_in, T, V)  ->  (N, C_out, T_out, V)
    N, C, T, V = x.shape
    B = len(branch_params)

    # --- Per-branch preprocessing. x slabs deduped by (window, stride,
    #     dilation) so identical branches share one HBM copy (review item).
    slab_of = {}
    slab_arrays, slab_touts = [], []
    slab_idx_per_branch, folded = [], []
    for A_scales, prm in zip(A_scales_list, branch_params):
        W, s, d = prm['window'], prm['stride'], prm['dilation']
        S = A_scales.shape[0] // (W * V)
        key_t = (W, s, d)
        if key_t not in slab_of:
            xw = unfold_temporal_windows(x, W, s, d)       # (N, T_out, C, W*V)
            slab_of[key_t] = len(slab_arrays)
            slab_touts.append(xw.shape[1])
            slab_arrays.append(xw.reshape(N * xw.shape[1], C * W * V))
        slab_idx_per_branch.append(slab_of[key_t])
        folded.append(fold_branch(A_scales, prm, C, c_out, S, V))
    assert len(set(slab_touts)) == 1, "branch temporal lengths must match to sum"
    T_out = slab_touts[0]
    num_slabs = len(slab_arrays)

    ROWS = N * T_out
    VO = V * c_out
    EWV_pad = _pad_lanes(max(f[0].shape[1] for f in folded))
    VO_pad = _pad_lanes(VO)
    CWV_pad0 = _round_up(max(a.shape[1] for a in slab_arrays), 128)

    # --- Tile sizing. TM is the arithmetic-intensity knob on the re-streamed
    #     M1 weight stream (intensity ~ TM FLOP/byte); TK only needs to keep
    #     the MXU busy. Keep the double-buffered working set under a budget
    #     that also fits v7x's 64 MiB VMEM.
    try:
        vmem_cap = int(pltpu.get_tpu_info().vmem_capacity_bytes)
    except Exception:
        vmem_cap = 64 * 1024 * 1024            # assume the smallest (v7x)
    VMEM_BUDGET = int(vmem_cap * 0.55)
    VMEM_LIMIT_CAP = int(vmem_cap * 0.75)

    def _choose_tk(tk_max):
        # Pick (TK, num_k) with TK <= tk_max, TK % 128 == 0, minimizing the
        # total K padding (review item: avoid round_up(CWV, TK) blow-up).
        nchunks = CWV_pad0 // 128
        max_chunks = max(1, tk_max // 128)
        best = None
        for nk in range(1, nchunks + 1):
            tkc = -(-nchunks // nk)
            if tkc > max_chunks:
                continue
            total = tkc * nk
            if best is None or total < best[2]:
                best = (tkc * 128, nk, total)
        return best[0], best[1]

    def _footprint(tm, tk):
        return (2 * tm * tk * 2                  # x tile (bf16, double-buffered)
                + 2 * tk * EWV_pad * 2           # m1 tile
                + 2 * EWV_pad * VO_pad * 2       # m2 tile
                + 2 * (EWV_pad + VO_pad) * 4     # biases (f32)
                + 2 * tm * VO_pad * 2            # out tile (bf16)
                + tm * EWV_pad * 4               # h_acc scratch
                + tm * VO_pad * 4)               # o_acc scratch

    TM = min(512, _round_up(ROWS, 8))
    if TM >= 256:
        TM = _round_up(TM, 256)                  # fill the 256-wide MXU (v6e/v7x)
    tk_max = 1024
    TK, num_k = _choose_tk(tk_max)
    while _footprint(TM, TK) > VMEM_BUDGET and (TM > 128 or tk_max > 256):
        if tk_max > 256:
            tk_max //= 2
        else:
            TM = max(128, TM // 2)
        TK, num_k = _choose_tk(tk_max)
    CWV_pad = TK * num_k
    R_pad = _round_up(ROWS, TM)
    num_r = R_pad // TM

    def pad2(a, r, c):
        return jnp.pad(a, ((0, r - a.shape[0]), (0, c - a.shape[1])))

    # bf16 matmul operands; biases / accumulation stay f32.
    x_all = jnp.stack([pad2(a, R_pad, CWV_pad) for a in slab_arrays]).astype(jnp.bfloat16)
    m1_all = jnp.stack([pad2(f[0], CWV_pad, EWV_pad) for f in folded]).astype(jnp.bfloat16)
    b1_all = jnp.stack([pad2(f[1], 1, EWV_pad) for f in folded])
    m2_all = jnp.stack([pad2(f[2], EWV_pad, VO_pad) for f in folded]).astype(jnp.bfloat16)
    b2_all = jnp.stack([pad2(f[3], 1, VO_pad) for f in folded])
    slab_idx = jnp.asarray(slab_idx_per_branch, dtype=jnp.int32)

    footprint = _footprint(TM, TK)
    vmem_limit = int(min(max(footprint + (8 << 20), 32 << 20), VMEM_LIMIT_CAP))

    flops = 2 * B * R_pad * (CWV_pad * EWV_pad + EWV_pad * VO_pad)
    bytes_accessed = int(
        num_r * (m1_all.size * 2 + m2_all.size * 2
                 + b1_all.size * 4 + b2_all.size * 4)   # weights re-streamed per row tile
        + B * R_pad * CWV_pad * 2                       # x stream (upper bound)
        + R_pad * VO_pad * 2)                           # single bf16 output slab

    out = pl.pallas_call(
        _mw_msg3d_kernel,
        out_shape=jax.ShapeDtypeStruct((R_pad, VO_pad), jnp.bfloat16),
        grid_spec=pltpu.PrefetchScalarGridSpec(
            num_scalar_prefetch=1,
            # rows outermost (parallel / megacore); branch + K are the serial
            # reduction axes feeding the in-kernel accumulators.
            grid=(num_r, B, num_k),
            in_specs=[
                pl.BlockSpec((None, TM, TK), lambda r, b, k, slab: (slab[b], r, k)),
                pl.BlockSpec((None, TK, EWV_pad), lambda r, b, k, slab: (b, k, 0)),
                pl.BlockSpec((None, 1, EWV_pad), lambda r, b, k, slab: (b, 0, 0)),
                pl.BlockSpec((None, EWV_pad, VO_pad), lambda r, b, k, slab: (b, 0, 0)),
                pl.BlockSpec((None, 1, VO_pad), lambda r, b, k, slab: (b, 0, 0)),
            ],
            out_specs=pl.BlockSpec((TM, VO_pad), lambda r, b, k, slab: (r, 0)),
            scratch_shapes=[pltpu.VMEM((TM, EWV_pad), jnp.float32),
                            pltpu.VMEM((TM, VO_pad), jnp.float32)],
        ),
        compiler_params=pltpu.CompilerParams(
            dimension_semantics=("parallel", "arbitrary", "arbitrary"),
            vmem_limit_bytes=vmem_limit),
        cost_estimate=pl.CostEstimate(
            flops=int(flops), transcendentals=0,
            bytes_accessed=int(bytes_accessed)),
    )(slab_idx, x_all, m1_all, b1_all, m2_all, b2_all)

    out = out[:ROWS, :VO].astype(jnp.float32)
    out = out.reshape(N, T_out, V, c_out)
    return jnp.transpose(out, (0, 3, 1, 2))          # NCHW: (N, C_out, T_out, V)


# ----------------------------------------------------------------------------
# Pure-JAX reference (follows the PyTorch op sequence, eval-mode BN, f32)
# ----------------------------------------------------------------------------
def _bn_eval(x, bn, eps=1e-5):
    g, b, mu, var = bn
    s = g / jnp.sqrt(var + eps)
    return x * s[None, :, None, None] + (b - mu * s)[None, :, None, None]


def msg3d_branch_reference(x, A_scales, prm):
    N, C, T, V = x.shape
    W, E = prm['window'], prm['embed']
    xw = unfold_temporal_windows(x, W, prm['stride'], prm['dilation'])
    xw = jnp.transpose(xw, (0, 2, 1, 3))                 # (N, C, T_out, W*V)
    Vw = xw.shape[-1]
    S = A_scales.shape[0] // Vw
    T_out = xw.shape[2]
    A = jnp.asarray(A_scales) + prm['A_res']
    agg = jnp.einsum('vu,nctu->nctv', A, xw)             # graph aggregation
    agg = (agg.reshape(N, C, T_out, S, Vw)
              .transpose(0, 3, 1, 2, 4).reshape(N, S * C, T_out, Vw))
    y1 = jnp.einsum('ek,nktv->netv', prm['W1'], agg) + prm['b1'][None, :, None, None]
    h = jnp.maximum(_bn_eval(y1, prm['bn1']), 0.0)       # MLP BN + ST-GCN ReLU
    h = h.reshape(N, E, T_out, W, V)
    y = jnp.einsum('oew,netwv->notv', prm['W3'], h) + prm['b3'][None, :, None, None]
    return _bn_eval(y, prm['bn2'])


# ----------------------------------------------------------------------------
if __name__ == "__main__":
    # batch=2, input_channels=4, T=16, joints V=16, output_channels=32
    N, C_IN, T, V = 2, 4, 16, 16
    C_OUT, SCALES = 32, 3
    WINDOW_SIZES, WINDOW_STRIDE, WINDOW_DILATIONS = [3, 3], 1, [1, 1]

    # Deterministic synthetic skeleton adjacency (chain graph over V joints).
    A_binary = np.zeros((V, V), dtype=np.float32)
    for i in range(V - 1):
        A_binary[i, i + 1] = 1.0
        A_binary[i + 1, i] = 1.0

    key = jax.random.PRNGKey(0)
    keys = jax.random.split(key, 1 + len(WINDOW_SIZES))
    x = jax.random.normal(keys[0], (N, C_IN, T, V), jnp.float32)

    A_scales_list, branch_params = [], []
    for bk, w, d in zip(keys[1:], WINDOW_SIZES, WINDOW_DILATIONS):
        A_scales_list.append(build_spatial_temporal_scales(A_binary, SCALES, w))
        branch_params.append(
            init_branch_params(bk, C_IN, C_OUT, SCALES, V, w, WINDOW_STRIDE, d))

    out = multi_window_msg3d_forward(x, A_scales_list, branch_params, C_OUT)
    out = jax.block_until_ready(out)

    ref = sum(msg3d_branch_reference(x, A_s, prm)
              for A_s, prm in zip(A_scales_list, branch_params))
    # bf16 matmul operands + bf16 output (f32 accumulation) => loose tolerance.
    np.testing.assert_allclose(np.asarray(out), np.asarray(ref), rtol=5e-2, atol=5e-2)
    print("KERNEL_OK")
</pallas_src>

<mosaic_0001>
module attributes {stable_mosaic.version = 11 : i64} {
  func.func @_mw_msg3d_kernel(%arg0: i32, %arg1: i32, %arg2: i32, %arg3: memref<2xi32, #tpu.memory_space<smem>>, %arg4: memref<1x32x256xbf16, #tpu.memory_space<vmem>>, %arg5: memref<1x256x256xbf16, #tpu.memory_space<vmem>>, %arg6: memref<1x1x256xf32, #tpu.memory_space<vmem>>, %arg7: memref<1x256x512xbf16, #tpu.memory_space<vmem>>, %arg8: memref<1x1x512xf32, #tpu.memory_space<vmem>>, %arg9: memref<32x512xbf16, #tpu.memory_space<vmem>>, %arg10: memref<32x256xf32, #tpu.memory_space<vmem>>, %arg11: memref<32x512xf32, #tpu.memory_space<vmem>>) attributes {dimension_semantics = [#tpu.dimension_semantics<parallel>, #tpu.dimension_semantics<arbitrary>, #tpu.dimension_semantics<arbitrary>], iteration_bounds = array<i64: 1, 2, 1>, scalar_prefetch = 1 : i64, scratch_operands = 2 : i64, tpu.core_type = #tpu.core_type<tc>, window_params = [{transform_indices = @transform_0, window_bounds = array<i64: 1, 32, 256>}, {transform_indices = @transform_1, window_bounds = array<i64: 1, 256, 256>}, {transform_indices = @transform_2, window_bounds = array<i64: 1, 1, 256>}, {transform_indices = @transform_3, window_bounds = array<i64: 1, 256, 512>}, {transform_indices = @transform_4, window_bounds = array<i64: 1, 1, 512>}, {transform_indices = @transform_5, window_bounds = array<i64: 32, 512>}]} {
    %c0_i32 = arith.constant 0 : i32
    %0 = arith.cmpi eq, %arg2, %c0_i32 : i32
    %1 = arith.extui %0 : i1 to i32
    %c0_i32_0 = arith.constant 0 : i32
    %2 = arith.cmpi ne, %1, %c0_i32_0 : i32
    scf.if %2 {
      %cst_12 = arith.constant 0.000000e+00 : f32
      %14 = vector.broadcast %cst_12 : f32 to vector<32x256xf32>
      %c0_13 = arith.constant 0 : index
      %c0_14 = arith.constant 0 : index
      %15 = vector.load %arg10[%c0_13, %c0_14] : memref<32x256xf32, #tpu.memory_space<vmem>>, vector<32x256xf32>
      tpu.vector_store %arg10[%c0_13, %c0_14], %14 {strides = array<i32>} : memref<32x256xf32, #tpu.memory_space<vmem>>, vector<32x256xf32>,
    } else {
    }
    %c0 = arith.constant 0 : index
    %c0_1 = arith.constant 0 : index
    %3 = vector.load %arg10[%c0, %c0_1] : memref<32x256xf32, #tpu.memory_space<vmem>>, vector<32x256xf32>
    %c0_2 = arith.constant 0 : index
    %c0_3 = arith.constant 0 : index
    %c0_4 = arith.constant 0 : index
    %4 = vector.load %arg4[%c0_2, %c0_3, %c0_4] : memref<1x32x256xbf16, #tpu.memory_space<vmem>>, vector<1x32x256xbf16>
    %5 = vector.shape_cast %4 : vector<1x32x256xbf16> to vector<32x256xbf16>
    %c0_5 = arith.constant 0 : index
    %c0_6 = arith.constant 0 : index
    %c0_7 = arith.constant 0 : index
    %6 = vector.load %arg5[%c0_5, %c0_6, %c0_7] : memref<1x256x256xbf16, #tpu.memory_space<vmem>>, vector<1x256x256xbf16>
    %7 = vector.shape_cast %6 : vector<1x256x256xbf16> to vector<256x256xbf16>
    %cst = arith.constant dense<0.000000e+00> : vector<32x256xf32>
    %8 = tpu.matmul %5, %7, %cst {dimension_numbers = #tpu.dot_dimension_numbers<[1], [0], [0], [1], [0, 0, 1, 1], [], []>} : vector<32x256xbf16>, vector<256x256xbf16>, vector<32x256xf32> -> vector<32x256xf32>
    %9 = arith.addf %3, %8 : vector<32x256xf32>
    %c0_8 = arith.constant 0 : index
    %c0_9 = arith.constant 0 : index
    %10 = vector.load %arg10[%c0_8, %c0_9] : memref<32x256xf32, #tpu.memory_space<vmem>>, vector<32x256xf32>
    tpu.vector_store %arg10[%c0_8, %c0_9], %9 {strides = array<i32>} : memref<32x256xf32, #tpu.memory_space<vmem>>, vector<32x256xf32>,
    %c0_i32_10 = arith.constant 0 : i32
    %11 = arith.cmpi eq, %arg2, %c0_i32_10 : i32
    %12 = arith.extui %11 : i1 to i32
    %c0_i32_11 = arith.constant 0 : i32
    %13 = arith.cmpi ne, %12, %c0_i32_11 : i32
    scf.if %13 {
      %c0_12 = arith.constant 0 : index
      %c0_13 = arith.constant 0 : index
      %14 = vector.load %arg10[%c0_12, %c0_13] : memref<32x256xf32, #tpu.memory_space<vmem>>, vector<32x256xf32>
      %c0_14 = arith.constant 0 : index
      %c0_15 = arith.constant 0 : index
      %c0_16 = arith.constant 0 : index
      %15 = vector.load %arg6[%c0_14, %c0_15, %c0_16] : memref<1x1x256xf32, #tpu.memory_space<vmem>>, vector<1x1x256xf32>
      %16 = vector.shape_cast %15 : vector<1x1x256xf32> to vector<1x256xf32>
      %17 = vector.broadcast %16 : vector<1x256xf32> to vector<32x256xf32>
      %18 = arith.addf %14, %17 : vector<32x256xf32>
      %cst_17 = arith.constant 0.000000e+00 : f32
      %19 = vector.broadcast %cst_17 : f32 to vector<32x256xf32>
      %20 = arith.maximumf %18, %19 : vector<32x256xf32>
      %21 = arith.truncf %20 : vector<32x256xf32> to vector<32x256xbf16>
      %c0_18 = arith.constant 0 : index
      %c0_19 = arith.constant 0 : index
      %c0_20 = arith.constant 0 : index
      %22 = vector.load %arg7[%c0_18, %c0_19, %c0_20] : memref<1x256x512xbf16, #tpu.memory_space<vmem>>, vector<1x256x512xbf16>
      %23 = vector.shape_cast %22 : vector<1x256x512xbf16> to vector<256x512xbf16>
      %cst_21 = arith.constant dense<0.000000e+00> : vector<32x512xf32>
      %24 = tpu.matmul %21, %23, %cst_21 {dimension_numbers = #tpu.dot_dimension_numbers<[1], [0], [0], [1], [0, 0, 1, 1], [], []>} : vector<32x256xbf16>, vector<256x512xbf16>, vector<32x512xf32> -> vector<32x512xf32>
      %c0_22 = arith.constant 0 : index
      %c0_23 = arith.constant 0 : index
      %c0_24 = arith.constant 0 : index
      %25 = vector.load %arg8[%c0_22, %c0_23, %c0_24] : memref<1x1x512xf32, #tpu.memory_space<vmem>>, vector<1x1x512xf32>
      %26 = vector.shape_cast %25 : vector<1x1x512xf32> to vector<1x512xf32>
      %27 = vector.broadcast %26 : vector<1x512xf32> to vector<32x512xf32>
      %28 = arith.addf %24, %27 : vector<32x512xf32>
      %c0_i32_25 = arith.constant 0 : i32
      %29 = arith.cmpi eq, %arg1, %c0_i32_25 : i32
      %30 = arith.extui %29 : i1 to i32
      %c0_i32_26 = arith.constant 0 : i32
      %31 = arith.cmpi ne, %30, %c0_i32_26 : i32
      scf.if %31 {
        %c0_30 = arith.constant 0 : index
        %c0_31 = arith.constant 0 : index
        %38 = vector.load %arg11[%c0_30, %c0_31] : memref<32x512xf32, #tpu.memory_space<vmem>>, vector<32x512xf32>
        tpu.vector_store %arg11[%c0_30, %c0_31], %28 {strides = array<i32>} : memref<32x512xf32, #tpu.memory_space<vmem>>, vector<32x512xf32>,
      } else {
      }
      %c0_i32_27 = arith.constant 0 : i32
      %32 = arith.cmpi ne, %arg1, %c0_i32_27 : i32
      %33 = arith.extui %32 : i1 to i32
      %c0_i32_28 = arith.constant 0 : i32
      %34 = arith.cmpi ne, %33, %c0_i32_28 : i32
      scf.if %34 {
        %c0_30 = arith.constant 0 : index
        %c0_31 = arith.constant 0 : index
        %38 = vector.load %arg11[%c0_30, %c0_31] : memref<32x512xf32, #tpu.memory_space<vmem>>, vector<32x512xf32>
        %39 = arith.addf %38, %28 : vector<32x512xf32>
        %c0_32 = arith.constant 0 : index
        %c0_33 = arith.constant 0 : index
        %40 = vector.load %arg11[%c0_32, %c0_33] : memref<32x512xf32, #tpu.memory_space<vmem>>, vector<32x512xf32>
        tpu.vector_store %arg11[%c0_32, %c0_33], %39 {strides = array<i32>} : memref<32x512xf32, #tpu.memory_space<vmem>>, vector<32x512xf32>,
      } else {
      }
      %c1_i32 = arith.constant 1 : i32
      %35 = arith.cmpi eq, %arg1, %c1_i32 : i32
      %36 = arith.extui %35 : i1 to i32
      %c0_i32_29 = arith.constant 0 : i32
      %37 = arith.cmpi ne, %36, %c0_i32_29 : i32
      scf.if %37 {
        %c0_30 = arith.constant 0 : index
        %c0_31 = arith.constant 0 : index
        %38 = vector.load %arg11[%c0_30, %c0_31] : memref<32x512xf32, #tpu.memory_space<vmem>>, vector<32x512xf32>
        %39 = arith.truncf %38 : vector<32x512xf32> to vector<32x512xbf16>
        %c0_32 = arith.constant 0 : index
        %c0_33 = arith.constant 0 : index
        %40 = vector.load %arg9[%c0_32, %c0_33] : memref<32x512xbf16, #tpu.memory_space<vmem>>, vector<32x512xbf16>
        tpu.vector_store %arg9[%c0_32, %c0_33], %39 {strides = array<i32>} : memref<32x512xbf16, #tpu.memory_space<vmem>>, vector<32x512xbf16>,
      } else {
      }
    } else {
    }
    return
  }
  func.func @transform_0(%arg0: i32, %arg1: i32, %arg2: i32, %arg3: memref<2xi32, #tpu.memory_space<smem>>) -> (i32, i32, i32) {
    %0 = arith.index_cast %arg1 : i32 to index
    %1 = memref.load %arg3[%0] : memref<2xi32, #tpu.memory_space<smem>>
    %c0_i32 = arith.constant 0 : i32
    return %1, %arg0, %arg2 : i32, i32, i32
  }
  func.func @transform_1(%arg0: i32, %arg1: i32, %arg2: i32, %arg3: memref<2xi32, #tpu.memory_space<smem>>) -> (i32, i32, i32) {
    %c0_i32 = arith.constant 0 : i32
    %c0_i32_0 = arith.constant 0 : i32
    return %arg1, %arg2, %c0_i32 : i32, i32, i32
  }
  func.func @transform_2(%arg0: i32, %arg1: i32, %arg2: i32, %arg3: memref<2xi32, #tpu.memory_space<smem>>) -> (i32, i32, i32) {
    %c0_i32 = arith.constant 0 : i32
    %c0_i32_0 = arith.constant 0 : i32
    %c0_i32_1 = arith.constant 0 : i32
    return %arg1, %c0_i32, %c0_i32_0 : i32, i32, i32
  }
  func.func @transform_3(%arg0: i32, %arg1: i32, %arg2: i32, %arg3: memref<2xi32, #tpu.memory_space<smem>>) -> (i32, i32, i32) {
    %c0_i32 = arith.constant 0 : i32
    %c0_i32_0 = arith.constant 0 : i32
    %c0_i32_1 = arith.constant 0 : i32
    return %arg1, %c0_i32, %c0_i32_0 : i32, i32, i32
  }
  func.func @transform_4(%arg0: i32, %arg1: i32, %arg2: i32, %arg3: memref<2xi32, #tpu.memory_space<smem>>) -> (i32, i32, i32) {
    %c0_i32 = arith.constant 0 : i32
    %c0_i32_0 = arith.constant 0 : i32
    %c0_i32_1 = arith.constant 0 : i32
    return %arg1, %c0_i32, %c0_i32_0 : i32, i32, i32
  }
  func.func @transform_5(%arg0: i32, %arg1: i32, %arg2: i32, %arg3: memref<2xi32, #tpu.memory_space<smem>>) -> (i32, i32) {
    %c0_i32 = arith.constant 0 : i32
    %c0_i32_0 = arith.constant 0 : i32
    return %arg0, %c0_i32 : i32, i32
  }
}

</mosaic_0001>

<llo_original>
// kernel: tpu_custom_call.1
$region0: #{tpu_custom_call.1}
  #allocation0 [shape = 'u32[]', space=smem, size = 0x4, offset = 0x4, fixed_abs, tag = 'smem constant byte address 0x4 - core index']
  #allocation1 [shape = 'u32[144,128]{1,0:T(1,128)}', space=vmem, size = 0x12000, scoped, tag = 'internal scratch']
  #allocation2 [shape = 'f32[32,256]{1,0:T(8,128)}', space=vmem, size = 0x8000, scoped, tag = 'scratch operand']
  #allocation3 [shape = 'f32[32,512]{1,0:T(8,128)}', space=vmem, size = 0x10000, scoped, tag = 'scratch operand']
  #allocation4 [shape = 's32[1]{0}', space=sflag, size = 0x4, scoped, tag = 'scoped memory for tpu_custom_call.1']
  #allocation5 [shape = 'u8[512]{0}', space=smem, size = 0x200, scoped, tag = 'prefetched SMEM operand 0']
  %s0 = inlined_call_operand.hbm [shape: s32[2], index: 0, kind: input, shape index: {}]
  %s1 = inlined_call_operand.hbm [shape: bf16[1,32,256], index: 1, kind: input, shape index: {}]
  %s2 = inlined_call_operand.hbm [shape: bf16[2,256,256], index: 2, kind: input, shape index: {}]
  %s3 = inlined_call_operand.vmem [shape: f32[2,1,256], index: 3, kind: input, shape index: {}]
  %s4 = inlined_call_operand.hbm [shape: bf16[2,256,512], index: 4, kind: input, shape index: {}]
  %s5 = inlined_call_operand.vmem [shape: f32[2,1,512], index: 5, kind: input, shape index: {}]
  %s6 = inlined_call_operand.hbm [shape: bf16[32,512], index: 6, kind: output, shape index: {}]
  %s7 = sld [smem:[#allocation0]]
  $region85: #{tpu_custom_call.1} parent=0
    _
  %s9 = ssub.s32 1, %s7
  %s10 = scalar_select 0, %s9, %s7
  %12 = dma.hbm_to_smem %s0, 16, [#allocation5], [#allocation4]
  %13 = dma.done [#allocation4], 16
  %14 = sfence
  $region1: #{tpu_custom_call.1} parent=0
    #allocation6 [shape = 'u8[32768]{0}', space=vmem, size = 0x8000, scoped, tag = 'input window, operand 1']
    #allocation7 [shape = 's32[2]{0}', space=sflag, size = 0x8, scoped, tag = 'scoped memory for tpu_custom_call.1']
    #allocation8 [shape = 's32[2]{0}', space=sflag, size = 0x8, scoped, tag = 'scoped memory for tpu_custom_call.1']
    #allocation9 [shape = 'u8[262144]{0}', space=vmem, size = 0x40000, scoped, tag = 'input window, operand 2']
    #allocation10 [shape = 's32[2]{0}', space=sflag, size = 0x8, scoped, tag = 'scoped memory for tpu_custom_call.1']
    #allocation11 [shape = 'u8[524288]{0}', space=vmem, size = 0x80000, scoped, tag = 'input window, operand 4']
    #allocation12 [shape = 'u8[32768]{0}', space=vmem, size = 0x8000, scoped, tag = 'output window, operand 0, single buffered']
    %15 = vsyncpa [#allocation7], 0
    %s16 = scalar_lea.sflag [#allocation7], 1
    %17 = vsyncpa %s16, 0
    %18 = vsyncpa [#allocation10], 0
    %s19 = scalar_lea.sflag [#allocation10], 1
    %20 = vsyncpa %s19, 0
    %21 = vsyncpa [#allocation8], 0
    loop: start=0, step=1, limit=4
    $region2: #{tpu_custom_call.1} parent=1 // loop_pre_header
      _
    $region3: #{tpu_custom_call.1} parent=1 // loop_header
      %s23 = sphi 0, %s27
      %p24 = scmp.ge.s32.totalorder %s23, 4
      %s30 = sphi 0, %s49
      %s31 = sphi 0, %s45
      %s32 = sphi 0, %s41
      %s33 = sphi 0, %s30
      %s34 = sphi 0, %s31
      %s35 = sphi 0, %s32
      %s36 = sphi 0, %s33
      %s37 = sphi 0, %s34
      %s38 = sphi 0, %s35
      %s58 = sphi 0, %s60
      %s61 = sphi 0, %s58
      %s62 = sphi 0, %s61
      %s78 = sphi 0, %s62
      %s86 = sphi 0, %s88
      %s89 = sphi 0, %s86
      %s90 = sphi 0, %s89
      %s106 = sphi 0, %s90
      %s112 = sphi 0, %s114
      %s115 = sphi 0, %s112
      %s116 = sphi 0, %s115
      %s132 = sphi 0, %s116
      %s138 = sphi 0, %s140
      %s141 = sphi 0, %s138
      %s142 = sphi 0, %s141
      %s158 = sphi 0, %s142
      %s164 = sphi 0, %s166
      %s167 = sphi 0, %s164
      %s168 = sphi 0, %s167
      %s184 = sphi 0, %s168
      %s190 = sphi 0, %s192
      %s193 = sphi 0, %s190
      %s194 = sphi 0, %s193
      %s210 = sphi 0, %s194
    $region4: #{tpu_custom_call.1} parent=1 // loop_header_branch
      %26 = sbr.rel (%p24) target = $region8
    $region5: #{tpu_custom_call.1} parent=1 // loop_body
      %s28 = ssub.s32 %s23, 1
      %s29 = ssub.s32 %s23, 2
      %s39 = sadd.s32 1, %s32
      %p40 = scmp.ge.s32.totalorder %s39, 1
      %s41 = scalar_select %p40, 0, %s39
      %s42 = sadd.s32 1, %s31
      %s43 = scalar_select %p40, %s42, %s31
      %p44 = scmp.ge.s32.totalorder %s43, 2
      %s45 = scalar_select %p44, 0, %s43
      %s46 = sadd.s32 1, %s30
      %s47 = scalar_select %p44, %s46, %s30
      %p48 = scmp.ge.s32.totalorder %s47, 1
      %s49 = scalar_select %p48, 0, %s47
      %s50 = sld [smem:[#allocation5 + %s31]]
      %s51 = sld [smem:[#allocation5 + %s45]]
      %s52 = ssub.s32 %s50, %s51
      %s53 = ssub.s32 %s30, %s49
      %s54 = sor.u32 %s52, %s53
      %s55 = ssub.s32 %s32, %s41
      %s56 = sor.u32 %s54, %s55
      %p57 = scmp.eq.s32.totalorder %s56, 0
      %s59 = sadd.s32 %s58, 1
      %s60 = scalar_select %p57, %s58, %s59
      %p63 = pneg %p57
      %p64 = scmp.eq.s32.totalorder %s23, 1
      %p65 = por %p63, %p64
      %p66 = scmp.ne.s32.totalorder %s58, %s61
      %p67 = scmp.eq.s32.totalorder %s23, 0
      %p68 = por %p66, %p67
      %p69 = scmp.ne.s32.totalorder %s58, %s61
      %p70 = scmp.eq.s32.totalorder %s28, 1
      %p71 = por %p69, %p70
      %p72 = scmp.ne.s32.totalorder %s61, %s62
      %p73 = scmp.eq.s32.totalorder %s28, 0
      %p74 = por %p72, %p73
      %p75 = scmp.ne.s32.totalorder %s61, %s62
      %p76 = scmp.eq.s32.totalorder %s29, 1
      %p77 = por %p75, %p76
      %p79 = scmp.ne.s32.totalorder %s62, %s78
      %p80 = scmp.eq.s32.totalorder %s29, 0
      %p81 = por %p79, %p80
      %s82 = ssub.s32 %s31, %s45
      %s83 = ssub.s32 %s32, %s41
      %s84 = sor.u32 %s82, %s83
      %p85 = scmp.eq.s32.totalorder %s84, 0
      %s87 = sadd.s32 %s86, 1
      %s88 = scalar_select %p85, %s86, %s87
      %p91 = pneg %p85
      %p92 = scmp.eq.s32.totalorder %s23, 1
      %p93 = por %p91, %p92
      %p94 = scmp.ne.s32.totalorder %s86, %s89
      %p95 = scmp.eq.s32.totalorder %s23, 0
      %p96 = por %p94, %p95
      %p97 = scmp.ne.s32.totalorder %s86, %s89
      %p98 = scmp.eq.s32.totalorder %s28, 1
      %p99 = por %p97, %p98
      %p100 = scmp.ne.s32.totalorder %s89, %s90
      %p101 = scmp.eq.s32.totalorder %s28, 0
      %p102 = por %p100, %p101
      %p103 = scmp.ne.s32.totalorder %s89, %s90
      %p104 = scmp.eq.s32.totalorder %s29, 1
      %p105 = por %p103, %p104
      %p107 = scmp.ne.s32.totalorder %s90, %s106
      %p108 = scmp.eq.s32.totalorder %s29, 0
      %p109 = por %p107, %p108
      %s110 = ssub.s32 %s31, %s45
      %p111 = scmp.eq.s32.totalorder %s110, 0
      %s113 = sadd.s32 %s112, 1
      %s114 = scalar_select %p111, %s112, %s113
      %p117 = pneg %p111
      %p118 = scmp.eq.s32.totalorder %s23, 1
      %p119 = por %p117, %p118
      %p120 = scmp.ne.s32.totalorder %s112, %s115
      %p121 = scmp.eq.s32.totalorder %s23, 0
      %p122 = por %p120, %p121
      %p123 = scmp.ne.s32.totalorder %s112, %s115
      %p124 = scmp.eq.s32.totalorder %s28, 1
      %p125 = por %p123, %p124
      %p126 = scmp.ne.s32.totalorder %s115, %s116
      %p127 = scmp.eq.s32.totalorder %s28, 0
      %p128 = por %p126, %p127
      %p129 = scmp.ne.s32.totalorder %s115, %s116
      %p130 = scmp.eq.s32.totalorder %s29, 1
      %p131 = por %p129, %p130
      %p133 = scmp.ne.s32.totalorder %s116, %s132
      %p134 = scmp.eq.s32.totalorder %s29, 0
      %p135 = por %p133, %p134
      %s136 = ssub.s32 %s31, %s45
      %p137 = scmp.eq.s32.totalorder %s136, 0
      %s139 = sadd.s32 %s138, 1
      %s140 = scalar_select %p137, %s138, %s139
      %p143 = pneg %p137
      %p144 = scmp.eq.s32.totalorder %s23, 1
      %p145 = por %p143, %p144
      %p146 = scmp.ne.s32.totalorder %s138, %s141
      %p147 = scmp.eq.s32.totalorder %s23, 0
      %p148 = por %p146, %p147
      %p149 = scmp.ne.s32.totalorder %s138, %s141
      %p150 = scmp.eq.s32.totalorder %s28, 1
      %p151 = por %p149, %p150
      %p152 = scmp.ne.s32.totalorder %s141, %s142
      %p153 = scmp.eq.s32.totalorder %s28, 0
      %p154 = por %p152, %p153
      %p155 = scmp.ne.s32.totalorder %s141, %s142
      %p156 = scmp.eq.s32.totalorder %s29, 1
      %p157 = por %p155, %p156
      %p159 = scmp.ne.s32.totalorder %s142, %s158
      %p160 = scmp.eq.s32.totalorder %s29, 0
      %p161 = por %p159, %p160
      %s162 = ssub.s32 %s31, %s45
      %p163 = scmp.eq.s32.totalorder %s162, 0
      %s165 = sadd.s32 %s164, 1
      %s166 = scalar_select %p163, %s164, %s165
      %p169 = pneg %p163
      %p170 = scmp.eq.s32.totalorder %s23, 1
      %p171 = por %p169, %p170
      %p172 = scmp.ne.s32.totalorder %s164, %s167
      %p173 = scmp.eq.s32.totalorder %s23, 0
      %p174 = por %p172, %p173
      %p175 = scmp.ne.s32.totalorder %s164, %s167
      %p176 = scmp.eq.s32.totalorder %s28, 1
      %p177 = por %p175, %p176
      %p178 = scmp.ne.s32.totalorder %s167, %s168
      %p179 = scmp.eq.s32.totalorder %s28, 0
      %p180 = por %p178, %p179
      %p181 = scmp.ne.s32.totalorder %s167, %s168
      %p182 = scmp.eq.s32.totalorder %s29, 1
      %p183 = por %p181, %p182
      %p185 = scmp.ne.s32.totalorder %s168, %s184
      %p186 = scmp.eq.s32.totalorder %s29, 0
      %p187 = por %p185, %p186
      %s188 = ssub.s32 %s30, %s49
      %p189 = scmp.eq.s32.totalorder %s188, 0
      %s191 = sadd.s32 %s190, 1
      %s192 = scalar_select %p189, %s190, %s191
      %p195 = pneg %p189
      %p196 = scmp.eq.s32.totalorder %s23, 1
      %p197 = por %p195, %p196
      %p198 = scmp.ne.s32.totalorder %s190, %s193
      %p199 = scmp.eq.s32.totalorder %s23, 0
      %p200 = por %p198, %p199
      %p201 = scmp.ne.s32.totalorder %s190, %s193
      %p202 = scmp.eq.s32.totalorder %s28, 1
      %p203 = por %p201, %p202
      %p204 = scmp.ne.s32.totalorder %s193, %s194
      %p205 = scmp.eq.s32.totalorder %s28, 0
      %p206 = por %p204, %p205
      %p207 = scmp.ne.s32.totalorder %s193, %s194
      %p208 = scmp.eq.s32.totalorder %s29, 1
      %p209 = por %p207, %p208
      %p211 = scmp.ne.s32.totalorder %s194, %s210
      %p212 = scmp.eq.s32.totalorder %s29, 0
      %p213 = por %p211, %p212
      %p214 = scmp.le.s32.totalorder 1, %s23
      %p215 = scmp.lt.s32.totalorder %s23, 3
      %p216 = pnand %p214, %p215
      %p217 = pneg %p216
      // Predicated region
      $region9: #{tpu_custom_call.1} parent=5 // pred_check
        _
      $region10: #{tpu_custom_call.1} parent=5 // pred_check_branch
        %219 = sbr.rel (%p216) target = $region12
      $region11: #{tpu_custom_call.1} parent=5 // pred_region
        %s220 = ssub.s32 %s23, 1
      $region12: #{tpu_custom_call.1} parent=5 // pred_fallthru
        _
      %p221 = scmp.lt.s32.totalorder %s23, 2
      // Predicated region
      $region13: #{tpu_custom_call.1} parent=5 // pred_check
        %p222 = pneg %p221
      $region14: #{tpu_custom_call.1} parent=5 // pred_check_branch
        %224 = sbr.rel (%p222) target = $region16
      $region15: #{tpu_custom_call.1} parent=5 // pred_region
        // Predicated region
        $region17: #{tpu_custom_call.1} parent=15 // pred_check
          %p225 = pneg %p68
        $region18: #{tpu_custom_call.1} parent=15 // pred_check_branch
          %227 = sbr.rel (%p225) target = $region20
        $region19: #{tpu_custom_call.1} parent=15 // pred_region
          %s228 = sand.u32 %s58, 1
          %s229 = scalar_lea.sflag [#allocation7], %s228
          %s230 = sand.u32 %s58, 1
          %s231 = smul.addr %s230, 32
          %s232 = scalar_lea.vmem [#allocation6], %s231
          %s233 = sld [smem:[#allocation5 + %s31]]
          %s234 = smul.u32 4, %s30
          %s235 = smul.u32 2, %s32
          %s237 = ssub.s32 512, 512
          %238 = vsyncadd %s229, %s237
          %s239 = smul.addr %s234, 2
          %s240 = sadd.s32 %s235, %s239
          %s241 = smul.addr %s233, 8
          %s242 = sadd.s32 %s240, %s241
          %s243 = smul.addr %s242, 64
          %s244 = scalar_lea.hbm %s1, %s243
          %s245 = sshll.u32 %s232, 4
          %s246 = int_to_ptr.vmem [resolvable:$true] %s245
          %251 = dma.hbm_to_vmem [thread:$0]  %s244, 512, %s246, %s229, 128, 128, 8
        $region20: #{tpu_custom_call.1} parent=15 // pred_fallthru
          _
        // Predicated region
        $region21: #{tpu_custom_call.1} parent=15 // pred_check
          %p252 = pneg %p96
        $region22: #{tpu_custom_call.1} parent=15 // pred_check_branch
          %254 = sbr.rel (%p252) target = $region24
        $region23: #{tpu_custom_call.1} parent=15 // pred_region
          %s255 = sand.u32 %s23, 1
          %s256 = scalar_lea.sflag [#allocation10], %s255
          %s257 = sand.u32 %s86, 1
          %s258 = smul.addr %s257, 256
          %s259 = scalar_lea.vmem [#allocation9], %s258
          %s260 = smul.u32 32, %s32
          %s262 = ssub.s32 4096, 4096
          %263 = vsyncadd %s256, %s262
          %s264 = smul.addr %s260, 2
          %s265 = smul.addr %s31, 64
          %s266 = sadd.s32 %s264, %s265
          %s267 = smul.addr %s266, 64
          %s268 = scalar_lea.hbm %s2, %s267
          %s269 = sshll.u32 %s259, 4
          %s270 = int_to_ptr.vmem [resolvable:$true] %s269
          %275 = dma.hbm_to_vmem [thread:$0]  %s268, 4096, %s270, %s256, 128, 128, 8
        $region24: #{tpu_custom_call.1} parent=15 // pred_fallthru
          _
        // Predicated region
        $region25: #{tpu_custom_call.1} parent=15 // pred_check
          %p276 = pneg %p122
        $region26: #{tpu_custom_call.1} parent=15 // pred_check_branch
          %278 = sbr.rel (%p276) target = $region28
        $region27: #{tpu_custom_call.1} parent=15 // pred_region
          %p279 = scmp.lt.s32.totalorder %s31, 1
          %s280 = scalar_select %p279, %s31, 1
          %s281 = smul.addr %s280, 2
          %s282 = scalar_lea.vmem %s3, %s281
        $region28: #{tpu_custom_call.1} parent=15 // pred_fallthru
          _
        // Predicated region
        $region29: #{tpu_custom_call.1} parent=15 // pred_check
          %p283 = pneg %p148
        $region30: #{tpu_custom_call.1} parent=15 // pred_check_branch
          %285 = sbr.rel (%p283) target = $region32
        $region31: #{tpu_custom_call.1} parent=15 // pred_region
          %s286 = sand.u32 %s23, 1
          %s287 = scalar_lea.sflag [#allocation10], %s286
          %s288 = sand.u32 %s138, 1
          %s289 = smul.addr %s288, 512
          %s290 = scalar_lea.vmem [#allocation11], %s289
          %s292 = ssub.s32 8192, 8192
          %293 = vsyncadd %s287, %s292
          %s294 = smul.addr %s31, 128
          %s295 = smul.addr %s294, 64
          %s296 = scalar_lea.hbm %s4, %s295
          %s297 = sshll.u32 %s290, 4
          %s298 = int_to_ptr.vmem [resolvable:$true] %s297
          %303 = dma.hbm_to_vmem [thread:$0]  %s296, 8192, %s298, %s287, 256, 256, 16
        $region32: #{tpu_custom_call.1} parent=15 // pred_fallthru
          _
        // Predicated region
        $region33: #{tpu_custom_call.1} parent=15 // pred_check
          %p304 = pneg %p174
        $region34: #{tpu_custom_call.1} parent=15 // pred_check_branch
          %306 = sbr.rel (%p304) target = $region36
        $region35: #{tpu_custom_call.1} parent=15 // pred_region
          %p307 = scmp.lt.s32.totalorder %s31, 1
          %s308 = scalar_select %p307, %s31, 1
          %s309 = smul.addr %s308, 4
          %s310 = scalar_lea.vmem %s5, %s309
        $region36: #{tpu_custom_call.1} parent=15 // pred_fallthru
          _
      $region16: #{tpu_custom_call.1} parent=5 // pred_fallthru
        _
      %p311 = scmp.le.s32.totalorder 1, %s23
      %p312 = scmp.lt.s32.totalorder %s23, 3
      %p313 = pnand %p311, %p312
      %p314 = pneg %p313
      // Predicated region
      $region37: #{tpu_custom_call.1} parent=5 // pred_check
        _
      $region38: #{tpu_custom_call.1} parent=5 // pred_check_branch
        %316 = sbr.rel (%p313) target = $region40
      $region39: #{tpu_custom_call.1} parent=5 // pred_region
        %s317 = ssub.s32 %s23, 1
        %s318 = sand.u32 %s61, 1
        %s319 = scalar_lea.sflag [#allocation7], %s318
        %s320 = sand.u32 %s61, 1
        %s321 = smul.addr %s320, 32
        %s322 = scalar_lea.vmem [#allocation6], %s321
        // Predicated region
        $region41: #{tpu_custom_call.1} parent=39 // pred_check
          %p323 = pneg %p74
        $region42: #{tpu_custom_call.1} parent=39 // pred_check_branch
          %325 = sbr.rel (%p323) target = $region44
        $region43: #{tpu_custom_call.1} parent=39 // pred_region
          %326 = dma.done %s319, 512
        $region44: #{tpu_custom_call.1} parent=39 // pred_fallthru
          _
        %s327 = sand.u32 %s28, 1
        %s328 = scalar_lea.sflag [#allocation10], %s327
        %s329 = sand.u32 %s89, 1
        %s330 = smul.addr %s329, 256
        %s331 = scalar_lea.vmem [#allocation9], %s330
        // Predicated region
        $region45: #{tpu_custom_call.1} parent=39 // pred_check
          %p332 = pneg %p102
        $region46: #{tpu_custom_call.1} parent=39 // pred_check_branch
          %334 = sbr.rel (%p332) target = $region48
        $region47: #{tpu_custom_call.1} parent=39 // pred_region
          %335 = dma.done %s328, 4096
        $region48: #{tpu_custom_call.1} parent=39 // pred_fallthru
          _
        %s336 = sand.u32 %s28, 1
        %s337 = scalar_lea.sflag [#allocation10], %s336
        %s338 = sand.u32 %s141, 1
        %s339 = smul.addr %s338, 512
        %s340 = scalar_lea.vmem [#allocation11], %s339
        // Predicated region
        $region49: #{tpu_custom_call.1} parent=39 // pred_check
          %p341 = pneg %p154
        $region50: #{tpu_custom_call.1} parent=39 // pred_check_branch
          %343 = sbr.rel (%p341) target = $region52
        $region51: #{tpu_custom_call.1} parent=39 // pred_region
          %344 = dma.done %s337, 8192
        $region52: #{tpu_custom_call.1} parent=39 // pred_fallthru
          _
        %s345 = sand.u32 %s61, 1
        %s346 = scalar_lea.sflag [#allocation7], %s345
        %s347 = sand.u32 %s61, 1
        %s348 = smul.addr %s347, 32
        %s349 = scalar_lea.vmem [#allocation6], %s348
        %p350 = pneg %p74
        %p351 = pneg %p71
        %s352 = sand.u32 %s28, 1
        %s353 = scalar_lea.sflag [#allocation10], %s352
        %s354 = sand.u32 %s89, 1
        %s355 = smul.addr %s354, 256
        %s356 = scalar_lea.vmem [#allocation9], %s355
        %p357 = pneg %p102
        %p358 = pneg %p99
        %p359 = scmp.lt.s32.totalorder %s34, 1
        %s360 = scalar_select %p359, %s34, 1
        %s361 = smul.addr %s360, 2
        %s362 = scalar_lea.vmem %s3, %s361
        %p363 = pneg %p128
        %p364 = pneg %p125
        %s365 = sand.u32 %s28, 1
        %s366 = scalar_lea.sflag [#allocation10], %s365
        %s367 = sand.u32 %s141, 1
        %s368 = smul.addr %s367, 512
        %s369 = scalar_lea.vmem [#allocation11], %s368
        %p370 = pneg %p154
        %p371 = pneg %p151
        %p372 = scmp.lt.s32.totalorder %s34, 1
        %s373 = scalar_select %p372, %s34, 1
        %s374 = smul.addr %s373, 4
        %s375 = scalar_lea.vmem %s5, %s374
        %p376 = pneg %p180
        %p377 = pneg %p177
        %p378 = pneg %p206
        %p379 = pneg %p203
        %s380 = sld [smem:[#allocation5 + %s34]]
        %s381 = smul.u32 4, %s33
        %s382 = smul.u32 2, %s35
        %s383 = smul.u32 32, %s35
        %p384 = scmp.lt.s32.totalorder %s34, 1
        %s385 = scalar_select %p384, %s34, 1
        %s386 = smul.addr %s385, 2
        %s387 = scalar_lea.vmem %s3, %s386
        %p388 = scmp.lt.s32.totalorder %s34, 1
        %s389 = scalar_select %p388, %s34, 1
        %s390 = smul.addr %s389, 4
        %s391 = scalar_lea.vmem %s5, %s390
        %s392 = smul.u32 4, %s33
        %p393 = scmp.eq.s32.totalorder %s35, 0
        // Predicated region
        $region53: #{tpu_custom_call.1} parent=39 // pred_check
          %p394 = pneg %p393
        $region54: #{tpu_custom_call.1} parent=39 // pred_check_branch
          %396 = sbr.rel (%p394) target = $region56
        $region55: #{tpu_custom_call.1} parent=39 // pred_region
          %397 = vst [vmem:[#allocation2] sm:$0xff] 0.0
          %398 = vst [vmem:[#allocation2 + $0x8] sm:$0xff] 0.0
          %399 = vst [vmem:[#allocation2 + $0x10] sm:$0xff] 0.0
          %400 = vst [vmem:[#allocation2 + $0x18] sm:$0xff] 0.0
          %401 = vst [vmem:[#allocation2 + $0x20] sm:$0xff] 0.0
          %402 = vst [vmem:[#allocation2 + $0x28] sm:$0xff] 0.0
          %403 = vst [vmem:[#allocation2 + $0x30] sm:$0xff] 0.0
          %404 = vst [vmem:[#allocation2 + $0x38] sm:$0xff] 0.0
        $region56: #{tpu_custom_call.1} parent=39 // pred_fallthru
          _
        %v405 = vld [vmem:[#allocation2] sm:$0xff]
        %v406 = vld [vmem:[#allocation2 + $0x8] sm:$0xff]
        %v407 = vld [vmem:[#allocation2 + $0x10] sm:$0xff]
        %v408 = vld [vmem:[#allocation2 + $0x18] sm:$0xff]
        %v409 = vld [vmem:[#allocation2 + $0x20] sm:$0xff]
        %v410 = vld [vmem:[#allocation2 + $0x28] sm:$0xff]
        %v411 = vld [vmem:[#allocation2 + $0x30] sm:$0xff]
        %v412 = vld [vmem:[#allocation2 + $0x38] sm:$0xff]
        %v413 = vld [vmem:[%s322] sm:$0xff]
        %v414 = vld [vmem:[%s322 + $0x8] sm:$0xff]
        %v415 = vld [vmem:[%s322 + $0x10] sm:$0xff]
        %v416 = vld [vmem:[%s322 + $0x18] sm:$0xff]
        %v417 = vld [vmem:[%s331] sm:$0xff]
        %v418 = vld [vmem:[%s331 + $0x8] sm:$0xff]
        %v419 = vld [vmem:[%s331 + $0x10] sm:$0xff]
        %v420 = vld [vmem:[%s331 + $0x18] sm:$0xff]
        %v421 = vld [vmem:[%s331 + $0x20] sm:$0xff]
        %v422 = vld [vmem:[%s331 + $0x28] sm:$0xff]
        %v423 = vld [vmem:[%s331 + $0x30] sm:$0xff]
        %v424 = vld [vmem:[%s331 + $0x38] sm:$0xff]
        %v425 = vld [vmem:[%s331 + $0x40] sm:$0xff]
        %v426 = vld [vmem:[%s331 + $0x48] sm:$0xff]
        %v427 = vld [vmem:[%s331 + $0x50] sm:$0xff]
        %v428 = vld [vmem:[%s331 + $0x58] sm:$0xff]
        %v429 = vld [vmem:[%s331 + $0x60] sm:$0xff]
        %v430 = vld [vmem:[%s331 + $0x68] sm:$0xff]
        %v431 = vld [vmem:[%s331 + $0x70] sm:$0xff]
        %v432 = vld [vmem:[%s331 + $0x78] sm:$0xff]
        %v433 = vld [vmem:[%s331 + $0x80] sm:$0xff]
        %v434 = vld [vmem:[%s331 + $0x88] sm:$0xff]
        %v435 = vld [vmem:[%s331 + $0x90] sm:$0xff]
        %v436 = vld [vmem:[%s331 + $0x98] sm:$0xff]
        %v437 = vld [vmem:[%s331 + $0xa0] sm:$0xff]
        %v438 = vld [vmem:[%s331 + $0xa8] sm:$0xff]
        %v439 = vld [vmem:[%s331 + $0xb0] sm:$0xff]
        %v440 = vld [vmem:[%s331 + $0xb8] sm:$0xff]
        %v441 = vld [vmem:[%s331 + $0xc0] sm:$0xff]
        %v442 = vld [vmem:[%s331 + $0xc8] sm:$0xff]
        %v443 = vld [vmem:[%s331 + $0xd0] sm:$0xff]
        %v444 = vld [vmem:[%s331 + $0xd8] sm:$0xff]
        %v445 = vld [vmem:[%s331 + $0xe0] sm:$0xff]
        %v446 = vld [vmem:[%s331 + $0xe8] sm:$0xff]
        %v447 = vld [vmem:[%s331 + $0xf0] sm:$0xff]
        %v448 = vld [vmem:[%s331 + $0xf8] sm:$0xff]
        %v453 = vunpack.c.l.b16 %v413
        %v454 = vunpack.c.h.b16 %v413
        %v455 = vunpack.c.l.b16 %v414
        %v456 = vunpack.c.h.b16 %v414
        %v457 = vunpack.c.l.b16 %v415
        %v458 = vunpack.c.h.b16 %v415
        %v459 = vunpack.c.l.b16 %v416
        %v460 = vunpack.c.h.b16 %v416
        %v461 = vpack.c.b16 %v455, %v453
        %v462 = vpack.c.b16 %v456, %v454
        %v463 = vpack.c.b16 %v459, %v457
        %v464 = vpack.c.b16 %v460, %v458
        %v501 = vunpack.c.l.b16 %v417
        %v502 = vunpack.c.h.b16 %v417
        %v503 = vunpack.c.l.b16 %v418
        %v504 = vunpack.c.h.b16 %v418
        %v505 = vunpack.c.l.b16 %v419
        %v506 = vunpack.c.h.b16 %v419
        %v507 = vunpack.c.l.b16 %v420
        %v508 = vunpack.c.h.b16 %v420
        %v509 = vunpack.c.l.b16 %v421
        %v510 = vunpack.c.h.b16 %v421
        %v511 = vunpack.c.l.b16 %v422
        %v512 = vunpack.c.h.b16 %v422
        %v513 = vunpack.c.l.b16 %v423
        %v514 = vunpack.c.h.b16 %v423
        %v515 = vunpack.c.l.b16 %v424
        %v516 = vunpack.c.h.b16 %v424
        %v517 = vunpack.c.l.b16 %v425
        %v518 = vunpack.c.h.b16 %v425
        %v519 = vunpack.c.l.b16 %v426
        %v520 = vunpack.c.h.b16 %v426
        %v521 = vunpack.c.l.b16 %v427
        %v522 = vunpack.c.h.b16 %v427
        %v523 = vunpack.c.l.b16 %v428
        %v524 = vunpack.c.h.b16 %v428
        %v525 = vunpack.c.l.b16 %v429
        %v526 = vunpack.c.h.b16 %v429
        %v527 = vunpack.c.l.b16 %v430
        %v528 = vunpack.c.h.b16 %v430
        %v529 = vunpack.c.l.b16 %v431
        %v530 = vunpack.c.h.b16 %v431
        %v531 = vunpack.c.l.b16 %v432
        %v532 = vunpack.c.h.b16 %v432
        %v533 = vunpack.c.l.b16 %v433
        %v534 = vunpack.c.h.b16 %v433
        %v535 = vunpack.c.l.b16 %v434
        %v536 = vunpack.c.h.b16 %v434
        %v537 = vunpack.c.l.b16 %v435
        %v538 = vunpack.c.h.b16 %v435
        %v539 = vunpack.c.l.b16 %v436
        %v540 = vunpack.c.h.b16 %v436
        %v541 = vunpack.c.l.b16 %v437
        %v542 = vunpack.c.h.b16 %v437
        %v543 = vunpack.c.l.b16 %v438
        %v544 = vunpack.c.h.b16 %v438
        %v545 = vunpack.c.l.b16 %v439
        %v546 = vunpack.c.h.b16 %v439
        %v547 = vunpack.c.l.b16 %v440
        %v548 = vunpack.c.h.b16 %v440
        %v549 = vunpack.c.l.b16 %v441
        %v550 = vunpack.c.h.b16 %v441
        %v551 = vunpack.c.l.b16 %v442
        %v552 = vunpack.c.h.b16 %v442
        %v553 = vunpack.c.l.b16 %v443
        %v554 = vunpack.c.h.b16 %v443
        %v555 = vunpack.c.l.b16 %v444
        %v556 = vunpack.c.h.b16 %v444
        %v557 = vunpack.c.l.b16 %v445
        %v558 = vunpack.c.h.b16 %v445
        %v559 = vunpack.c.l.b16 %v446
        %v560 = vunpack.c.h.b16 %v446
        %v561 = vunpack.c.l.b16 %v447
        %v562 = vunpack.c.h.b16 %v447
        %v563 = vunpack.c.l.b16 %v448
        %v564 = vunpack.c.h.b16 %v448
        %v565 = vpack.c.b16 %v503, %v501
        %v566 = vpack.c.b16 %v504, %v502
        %v567 = vpack.c.b16 %v507, %v505
        %v568 = vpack.c.b16 %v508, %v506
        %v569 = vpack.c.b16 %v511, %v509
        %v570 = vpack.c.b16 %v512, %v510
        %v571 = vpack.c.b16 %v515, %v513
        %v572 = vpack.c.b16 %v516, %v514
        %v573 = vpack.c.b16 %v519, %v517
        %v574 = vpack.c.b16 %v520, %v518
        %v575 = vpack.c.b16 %v523, %v521
        %v576 = vpack.c.b16 %v524, %v522
        %v577 = vpack.c.b16 %v527, %v525
        %v578 = vpack.c.b16 %v528, %v526
        %v579 = vpack.c.b16 %v531, %v529
        %v580 = vpack.c.b16 %v532, %v530
        %v581 = vpack.c.b16 %v535, %v533
        %v582 = vpack.c.b16 %v536, %v534
        %v583 = vpack.c.b16 %v539, %v537
        %v584 = vpack.c.b16 %v540, %v538
        %v585 = vpack.c.b16 %v543, %v541
        %v586 = vpack.c.b16 %v544, %v542
        %v587 = vpack.c.b16 %v547, %v545
        %v588 = vpack.c.b16 %v548, %v546
        %v589 = vpack.c.b16 %v551, %v549
        %v590 = vpack.c.b16 %v552, %v550
        %v591 = vpack.c.b16 %v555, %v553
        %v592 = vpack.c.b16 %v556, %v554
        %v593 = vpack.c.b16 %v559, %v557
        %v594 = vpack.c.b16 %v560, %v558
        %v595 = vpack.c.b16 %v563, %v561
        %v596 = vpack.c.b16 %v564, %v562
        %629 = vmatprep.subr.bf16.mxu0 %v566
        %630 = vmatpush1.bf16.msra.mxu0 %v565
        %631 = vmatprep.subr.bf16.mxu0 %v568
        %632 = vmatpush1.bf16.msra.mxu0 %v567
        %633 = vmatprep.subr.bf16.mxu0 %v570
        %634 = vmatpush1.bf16.msra.mxu0 %v569
        %635 = vmatprep.subr.bf16.mxu0 %v572
        %636 = vmatpush1.bf16.msra.mxu0 %v571
        %637 = vmatprep.subr.bf16.mxu0 %v574
        %638 = vmatpush1.bf16.msra.mxu0 %v573
        %639 = vmatprep.subr.bf16.mxu0 %v576
        %640 = vmatpush1.bf16.msra.mxu0 %v575
        %641 = vmatprep.subr.bf16.mxu0 %v578
        %642 = vmatpush1.bf16.msra.mxu0 %v577
        %643 = vmatprep.subr.bf16.mxu0 %v580
        %644 = vmatpush1.bf16.msra.mxu0 %v579
        %645 = vmatprep.subr.bf16.mxu0 %v582
        %646 = vmatpush1.bf16.msra.mxu0 %v581
        %647 = vmatprep.subr.bf16.mxu0 %v584
        %648 = vmatpush1.bf16.msra.mxu0 %v583
        %649 = vmatprep.subr.bf16.mxu0 %v586
        %650 = vmatpush1.bf16.msra.mxu0 %v585
        %651 = vmatprep.subr.bf16.mxu0 %v588
        %652 = vmatpush1.bf16.msra.mxu0 %v587
        %653 = vmatprep.subr.bf16.mxu0 %v590
        %654 = vmatpush1.bf16.msra.mxu0 %v589
        %655 = vmatprep.subr.bf16.mxu0 %v592
        %656 = vmatpush1.bf16.msra.mxu0 %v591
        %657 = vmatprep.subr.bf16.mxu0 %v594
        %658 = vmatpush1.bf16.msra.mxu0 %v593
        %659 = vmatprep.subr.bf16.mxu0 %v596
        %660 = vmatpush1.bf16.msra.mxu0 %v595
        %661 = vmatprep.mubr.bf16.mxu0 %v462
        %662 = vmatmul.mubr.bf16.gmra.mrb[0].mxu0 %v461
        %v663 = vpop.f32.mrb[0].mxu0
        %v664 = vadd.f32 0.0, %v663
        %v665 = vpop.f32.mrb[0].mxu0
        %v666 = vadd.f32 0.0, %v665
        %v667 = vpop.f32.mrb[0].mxu0
        %v668 = vadd.f32 0.0, %v667
        %v669 = vpop.f32.mrb[0].mxu0
        %v670 = vadd.f32 0.0, %v669
        %671 = vmatprep.mubr.bf16.mxu0 %v464
        %672 = vmatmul.mubr.bf16.gmra.mrb[0].mxu0 %v463
        %v673 = vpop.f32.mrb[0].mxu0
        %v674 = vadd.f32 0.0, %v673
        %v675 = vpop.f32.mrb[0].mxu0
        %v676 = vadd.f32 0.0, %v675
        %v677 = vpop.f32.mrb[0].mxu0
        %v678 = vadd.f32 0.0, %v677
        %v679 = vpop.f32.mrb[0].mxu0
        %v680 = vadd.f32 0.0, %v679
        %681 = vdwg.mxu0
        %v682 = vadd.f32 %v405, %v664
        %v683 = vadd.f32 %v406, %v666
        %v684 = vadd.f32 %v407, %v668
        %v685 = vadd.f32 %v408, %v670
        %v686 = vadd.f32 %v409, %v674
        %v687 = vadd.f32 %v410, %v676
        %v688 = vadd.f32 %v411, %v678
        %v689 = vadd.f32 %v412, %v680
        %690 = vst [vmem:[#allocation2] sm:$0xff] %v682
        %691 = vst [vmem:[#allocation2 + $0x8] sm:$0xff] %v683
        %692 = vst [vmem:[#allocation2 + $0x10] sm:$0xff] %v684
        %693 = vst [vmem:[#allocation2 + $0x18] sm:$0xff] %v685
        %694 = vst [vmem:[#allocation2 + $0x20] sm:$0xff] %v686
        %695 = vst [vmem:[#allocation2 + $0x28] sm:$0xff] %v687
        %696 = vst [vmem:[#allocation2 + $0x30] sm:$0xff] %v688
        %697 = vst [vmem:[#allocation2 + $0x38] sm:$0xff] %v689
        // Predicated region
        $region57: #{tpu_custom_call.1} parent=39 // pred_check
          %p698 = pneg %p393
        $region58: #{tpu_custom_call.1} parent=39 // pred_check_branch
          %700 = sbr.rel (%p698) target = $region60
        $region59: #{tpu_custom_call.1} parent=39 // pred_region
          %v701 = vld [vmem:[#allocation2] sm:$0xff]
          %v702 = vld [vmem:[#allocation2 + $0x8] sm:$0xff]
          %v703 = vld [vmem:[#allocation2 + $0x10] sm:$0xff]
          %v704 = vld [vmem:[#allocation2 + $0x18] sm:$0xff]
          %v705 = vld [vmem:[#allocation2 + $0x20] sm:$0xff]
          %v706 = vld [vmem:[#allocation2 + $0x28] sm:$0xff]
          %v707 = vld [vmem:[#allocation2 + $0x30] sm:$0xff]
          %v708 = vld [vmem:[#allocation2 + $0x38] sm:$0xff]
          %v709 = vld [vmem:[%s387] sm:$0x3]
          %v711 = vlaneseq
          %v712 = vshrl.u32 %v711, 7
          %v713 = vsub.s32 0, %v712
          %v714 = vrot.slane %v709, %v713
          %v715 = vlaneseq
          %v716 = vshrl.u32 %v715, 7
          %v717 = vsub.s32 1, %v716
          %v718 = vrot.slane %v709, %v717
          %v721 = vadd.f32 %v701, %v714
          %v722 = vadd.f32 %v702, %v718
          %v723 = vadd.f32 %v703, %v714
          %v724 = vadd.f32 %v704, %v718
          %v725 = vadd.f32 %v705, %v714
          %v726 = vadd.f32 %v706, %v718
          %v727 = vadd.f32 %v707, %v714
          %v728 = vadd.f32 %v708, %v718
          %v729 = vmax.f32 %v721, 0.0
          %v730 = vmax.f32 %v722, 0.0
          %v731 = vmax.f32 %v723, 0.0
          %v732 = vmax.f32 %v724, 0.0
          %v733 = vmax.f32 %v725, 0.0
          %v734 = vmax.f32 %v726, 0.0
          %v735 = vmax.f32 %v727, 0.0
          %v736 = vmax.f32 %v728, 0.0
          %v737 = vpack.c.bf16 %v731, %v729
          %v738 = vpack.c.bf16 %v732, %v730
          %v739 = vpack.c.bf16 %v735, %v733
          %v740 = vpack.c.bf16 %v736, %v734
          %v741 = vld [vmem:[%s340] sm:$0xff]
          %v742 = vld [vmem:[%s340 + $0x8] sm:$0xff]
          %v743 = vld [vmem:[%s340 + $0x10] sm:$0xff]
          %v744 = vld [vmem:[%s340 + $0x18] sm:$0xff]
          %v745 = vld [vmem:[%s340 + $0x20] sm:$0xff]
          %v746 = vld [vmem:[%s340 + $0x28] sm:$0xff]
          %v747 = vld [vmem:[%s340 + $0x30] sm:$0xff]
          %v748 = vld [vmem:[%s340 + $0x38] sm:$0xff]
          %v749 = vld [vmem:[%s340 + $0x40] sm:$0xff]
          %v750 = vld [vmem:[%s340 + $0x48] sm:$0xff]
          %v751 = vld [vmem:[%s340 + $0x50] sm:$0xff]
          %v752 = vld [vmem:[%s340 + $0x58] sm:$0xff]
          %v753 = vld [vmem:[%s340 + $0x60] sm:$0xff]
          %v754 = vld [vmem:[%s340 + $0x68] sm:$0xff]
          %v755 = vld [vmem:[%s340 + $0x70] sm:$0xff]
          %v756 = vld [vmem:[%s340 + $0x78] sm:$0xff]
          %v757 = vld [vmem:[%s340 + $0x80] sm:$0xff]
          %v758 = vld [vmem:[%s340 + $0x88] sm:$0xff]
          %v759 = vld [vmem:[%s340 + $0x90] sm:$0xff]
          %v760 = vld [vmem:[%s340 + $0x98] sm:$0xff]
          %v761 = vld [vmem:[%s340 + $0xa0] sm:$0xff]
          %v762 = vld [vmem:[%s340 + $0xa8] sm:$0xff]
          %v763 = vld [vmem:[%s340 + $0xb0] sm:$0xff]
          %v764 = vld [vmem:[%s340 + $0xb8] sm:$0xff]
          %v765 = vld [vmem:[%s340 + $0xc0] sm:$0xff]
          %v766 = vld [vmem:[%s340 + $0xc8] sm:$0xff]
          %v767 = vld [vmem:[%s340 + $0xd0] sm:$0xff]
          %v768 = vld [vmem:[%s340 + $0xd8] sm:$0xff]
          %v769 = vld [vmem:[%s340 + $0xe0] sm:$0xff]
          %v770 = vld [vmem:[%s340 + $0xe8] sm:$0xff]
          %v771 = vld [vmem:[%s340 + $0xf0] sm:$0xff]
          %v772 = vld [vmem:[%s340 + $0xf8] sm:$0xff]
          %v773 = vld [vmem:[%s340 + $0x100] sm:$0xff]
          %v774 = vld [vmem:[%s340 + $0x108] sm:$0xff]
          %v775 = vld [vmem:[%s340 + $0x110] sm:$0xff]
          %v776 = vld [vmem:[%s340 + $0x118] sm:$0xff]
          %v777 = vld [vmem:[%s340 + $0x120] sm:$0xff]
          %v778 = vld [vmem:[%s340 + $0x128] sm:$0xff]
          %v779 = vld [vmem:[%s340 + $0x130] sm:$0xff]
          %v780 = vld [vmem:[%s340 + $0x138] sm:$0xff]
          %v781 = vld [vmem:[%s340 + $0x140] sm:$0xff]
          %v782 = vld [vmem:[%s340 + $0x148] sm:$0xff]
          %v783 = vld [vmem:[%s340 + $0x150] sm:$0xff]
          %v784 = vld [vmem:[%s340 + $0x158] sm:$0xff]
          %v785 = vld [vmem:[%s340 + $0x160] sm:$0xff]
          %v786 = vld [vmem:[%s340 + $0x168] sm:$0xff]
          %v787 = vld [vmem:[%s340 + $0x170] sm:$0xff]
          %v788 = vld [vmem:[%s340 + $0x178] sm:$0xff]
          %v789 = vld [vmem:[%s340 + $0x180] sm:$0xff]
          %v790 = vld [vmem:[%s340 + $0x188] sm:$0xff]
          %v791 = vld [vmem:[%s340 + $0x190] sm:$0xff]
          %v792 = vld [vmem:[%s340 + $0x198] sm:$0xff]
          %v793 = vld [vmem:[%s340 + $0x1a0] sm:$0xff]
          %v794 = vld [vmem:[%s340 + $0x1a8] sm:$0xff]
          %v795 = vld [vmem:[%s340 + $0x1b0] sm:$0xff]
          %v796 = vld [vmem:[%s340 + $0x1b8] sm:$0xff]
          %v797 = vld [vmem:[%s340 + $0x1c0] sm:$0xff]
          %v798 = vld [vmem:[%s340 + $0x1c8] sm:$0xff]
          %v799 = vld [vmem:[%s340 + $0x1d0] sm:$0xff]
          %v800 = vld [vmem:[%s340 + $0x1d8] sm:$0xff]
          %v801 = vld [vmem:[%s340 + $0x1e0] sm:$0xff]
          %v802 = vld [vmem:[%s340 + $0x1e8] sm:$0xff]
          %v803 = vld [vmem:[%s340 + $0x1f0] sm:$0xff]
          %v804 = vld [vmem:[%s340 + $0x1f8] sm:$0xff]
          %v805 = vld [vmem:[%s391] sm:$0xf]
          %v807 = vlaneseq
          %v808 = vshrl.u32 %v807, 7
          %v809 = vsub.s32 0, %v808
          %v810 = vrot.slane %v805, %v809
          %v811 = vlaneseq
          %v812 = vshrl.u32 %v811, 7
          %v813 = vsub.s32 1, %v812
          %v814 = vrot.slane %v805, %v813
          %v815 = vlaneseq
          %v816 = vshrl.u32 %v815, 7
          %v817 = vsub.s32 2, %v816
          %v818 = vrot.slane %v805, %v817
          %v819 = vlaneseq
          %v820 = vshrl.u32 %v819, 7
          %v821 = vsub.s32 3, %v820
          %v822 = vrot.slane %v805, %v821
          %v891 = vunpack.c.l.b16 %v741
          %v892 = vunpack.c.h.b16 %v741
          %v893 = vunpack.c.l.b16 %v742
          %v894 = vunpack.c.h.b16 %v742
          %v895 = vunpack.c.l.b16 %v743
          %v896 = vunpack.c.h.b16 %v743
          %v897 = vunpack.c.l.b16 %v744
          %v898 = vunpack.c.h.b16 %v744
          %v899 = vunpack.c.l.b16 %v745
          %v900 = vunpack.c.h.b16 %v745
          %v901 = vunpack.c.l.b16 %v746
          %v902 = vunpack.c.h.b16 %v746
          %v903 = vunpack.c.l.b16 %v747
          %v904 = vunpack.c.h.b16 %v747
          %v905 = vunpack.c.l.b16 %v748
          %v906 = vunpack.c.h.b16 %v748
          %v907 = vunpack.c.l.b16 %v749
          %v908 = vunpack.c.h.b16 %v749
          %v909 = vunpack.c.l.b16 %v750
          %v910 = vunpack.c.h.b16 %v750
          %v911 = vunpack.c.l.b16 %v751
          %v912 = vunpack.c.h.b16 %v751
          %v913 = vunpack.c.l.b16 %v752
          %v914 = vunpack.c.h.b16 %v752
          %v915 = vunpack.c.l.b16 %v753
          %v916 = vunpack.c.h.b16 %v753
          %v917 = vunpack.c.l.b16 %v754
          %v918 = vunpack.c.h.b16 %v754
          %v919 = vunpack.c.l.b16 %v755
          %v920 = vunpack.c.h.b16 %v755
          %v921 = vunpack.c.l.b16 %v756
          %v922 = vunpack.c.h.b16 %v756
          %v923 = vunpack.c.l.b16 %v757
          %v924 = vunpack.c.h.b16 %v757
          %v925 = vunpack.c.l.b16 %v758
          %v926 = vunpack.c.h.b16 %v758
          %v927 = vunpack.c.l.b16 %v759
          %v928 = vunpack.c.h.b16 %v759
          %v929 = vunpack.c.l.b16 %v760
          %v930 = vunpack.c.h.b16 %v760
          %v931 = vunpack.c.l.b16 %v761
          %v932 = vunpack.c.h.b16 %v761
          %v933 = vunpack.c.l.b16 %v762
          %v934 = vunpack.c.h.b16 %v762
          %v935 = vunpack.c.l.b16 %v763
          %v936 = vunpack.c.h.b16 %v763
          %v937 = vunpack.c.l.b16 %v764
          %v938 = vunpack.c.h.b16 %v764
          %v939 = vunpack.c.l.b16 %v765
          %v940 = vunpack.c.h.b16 %v765
          %v941 = vunpack.c.l.b16 %v766
          %v942 = vunpack.c.h.b16 %v766
          %v943 = vunpack.c.l.b16 %v767
          %v944 = vunpack.c.h.b16 %v767
          %v945 = vunpack.c.l.b16 %v768
          %v946 = vunpack.c.h.b16 %v768
          %v947 = vunpack.c.l.b16 %v769
          %v948 = vunpack.c.h.b16 %v769
          %v949 = vunpack.c.l.b16 %v770
          %v950 = vunpack.c.h.b16 %v770
          %v951 = vunpack.c.l.b16 %v771
          %v952 = vunpack.c.h.b16 %v771
          %v953 = vunpack.c.l.b16 %v772
          %v954 = vunpack.c.h.b16 %v772
          %v955 = vunpack.c.l.b16 %v773
          %v956 = vunpack.c.h.b16 %v773
          %v957 = vunpack.c.l.b16 %v774
          %v958 = vunpack.c.h.b16 %v774
          %v959 = vunpack.c.l.b16 %v775
          %v960 = vunpack.c.h.b16 %v775
          %v961 = vunpack.c.l.b16 %v776
          %v962 = vunpack.c.h.b16 %v776
          %v963 = vunpack.c.l.b16 %v777
          %v964 = vunpack.c.h.b16 %v777
          %v965 = vunpack.c.l.b16 %v778
          %v966 = vunpack.c.h.b16 %v778
          %v967 = vunpack.c.l.b16 %v779
          %v968 = vunpack.c.h.b16 %v779
          %v969 = vunpack.c.l.b16 %v780
          %v970 = vunpack.c.h.b16 %v780
          %v971 = vunpack.c.l.b16 %v781
          %v972 = vunpack.c.h.b16 %v781
          %v973 = vunpack.c.l.b16 %v782
          %v974 = vunpack.c.h.b16 %v782
          %v975 = vunpack.c.l.b16 %v783
          %v976 = vunpack.c.h.b16 %v783
          %v977 = vunpack.c.l.b16 %v784
          %v978 = vunpack.c.h.b16 %v784
          %v979 = vunpack.c.l.b16 %v785
          %v980 = vunpack.c.h.b16 %v785
          %v981 = vunpack.c.l.b16 %v786
          %v982 = vunpack.c.h.b16 %v786
          %v983 = vunpack.c.l.b16 %v787
          %v984 = vunpack.c.h.b16 %v787
          %v985 = vunpack.c.l.b16 %v788
          %v986 = vunpack.c.h.b16 %v788
          %v987 = vunpack.c.l.b16 %v789
          %v988 = vunpack.c.h.b16 %v789
          %v989 = vunpack.c.l.b16 %v790
          %v990 = vunpack.c.h.b16 %v790
          %v991 = vunpack.c.l.b16 %v791
          %v992 = vunpack.c.h.b16 %v791
          %v993 = vunpack.c.l.b16 %v792
          %v994 = vunpack.c.h.b16 %v792
          %v995 = vunpack.c.l.b16 %v793
          %v996 = vunpack.c.h.b16 %v793
          %v997 = vunpack.c.l.b16 %v794
          %v998 = vunpack.c.h.b16 %v794
          %v999 = vunpack.c.l.b16 %v795
          %v1000 = vunpack.c.h.b16 %v795
          %v1001 = vunpack.c.l.b16 %v796
          %v1002 = vunpack.c.h.b16 %v796
          %v1003 = vunpack.c.l.b16 %v797
          %v1004 = vunpack.c.h.b16 %v797
          %v1005 = vunpack.c.l.b16 %v798
          %v1006 = vunpack.c.h.b16 %v798
          %v1007 = vunpack.c.l.b16 %v799
          %v1008 = vunpack.c.h.b16 %v799
          %v1009 = vunpack.c.l.b16 %v800
          %v1010 = vunpack.c.h.b16 %v800
          %v1011 = vunpack.c.l.b16 %v801
          %v1012 = vunpack.c.h.b16 %v801
          %v1013 = vunpack.c.l.b16 %v802
          %v1014 = vunpack.c.h.b16 %v802
          %v1015 = vunpack.c.l.b16 %v803
          %v1016 = vunpack.c.h.b16 %v803
          %v1017 = vunpack.c.l.b16 %v804
          %v1018 = vunpack.c.h.b16 %v804
          %v1019 = vpack.c.b16 %v895, %v891
          %v1020 = vpack.c.b16 %v896, %v892
          %v1021 = vpack.c.b16 %v897, %v893
          %v1022 = vpack.c.b16 %v898, %v894
          %v1023 = vpack.c.b16 %v903, %v899
          %v1024 = vpack.c.b16 %v904, %v900
          %v1025 = vpack.c.b16 %v905, %v901
          %v1026 = vpack.c.b16 %v906, %v902
          %v1027 = vpack.c.b16 %v911, %v907
          %v1028 = vpack.c.b16 %v912, %v908
          %v1029 = vpack.c.b16 %v913, %v909
          %v1030 = vpack.c.b16 %v914, %v910
          %v1031 = vpack.c.b16 %v919, %v915
          %v1032 = vpack.c.b16 %v920, %v916
          %v1033 = vpack.c.b16 %v921, %v917
          %v1034 = vpack.c.b16 %v922, %v918
          %v1035 = vpack.c.b16 %v927, %v923
          %v1036 = vpack.c.b16 %v928, %v924
          %v1037 = vpack.c.b16 %v929, %v925
          %v1038 = vpack.c.b16 %v930, %v926
          %v1039 = vpack.c.b16 %v935, %v931
          %v1040 = vpack.c.b16 %v936, %v932
          %v1041 = vpack.c.b16 %v937, %v933
          %v1042 = vpack.c.b16 %v938, %v934
          %v1043 = vpack.c.b16 %v943, %v939
          %v1044 = vpack.c.b16 %v944, %v940
          %v1045 = vpack.c.b16 %v945, %v941
          %v1046 = vpack.c.b16 %v946, %v942
          %v1047 = vpack.c.b16 %v951, %v947
          %v1048 = vpack.c.b16 %v952, %v948
          %v1049 = vpack.c.b16 %v953, %v949
          %v1050 = vpack.c.b16 %v954, %v950
          %v1051 = vpack.c.b16 %v959, %v955
          %v1052 = vpack.c.b16 %v960, %v956
          %v1053 = vpack.c.b16 %v961, %v957
          %v1054 = vpack.c.b16 %v962, %v958
          %v1055 = vpack.c.b16 %v967, %v963
          %v1056 = vpack.c.b16 %v968, %v964
          %v1057 = vpack.c.b16 %v969, %v965
          %v1058 = vpack.c.b16 %v970, %v966
          %v1059 = vpack.c.b16 %v975, %v971
          %v1060 = vpack.c.b16 %v976, %v972
          %v1061 = vpack.c.b16 %v977, %v973
          %v1062 = vpack.c.b16 %v978, %v974
          %v1063 = vpack.c.b16 %v983, %v979
          %v1064 = vpack.c.b16 %v984, %v980
          %v1065 = vpack.c.b16 %v985, %v981
          %v1066 = vpack.c.b16 %v986, %v982
          %v1067 = vpack.c.b16 %v991, %v987
          %v1068 = vpack.c.b16 %v992, %v988
          %v1069 = vpack.c.b16 %v993, %v989
          %v1070 = vpack.c.b16 %v994, %v990
          %v1071 = vpack.c.b16 %v999, %v995
          %v1072 = vpack.c.b16 %v1000, %v996
          %v1073 = vpack.c.b16 %v1001, %v997
          %v1074 = vpack.c.b16 %v1002, %v998
          %v1075 = vpack.c.b16 %v1007, %v1003
          %v1076 = vpack.c.b16 %v1008, %v1004
          %v1077 = vpack.c.b16 %v1009, %v1005
          %v1078 = vpack.c.b16 %v1010, %v1006
          %v1079 = vpack.c.b16 %v1015, %v1011
          %v1080 = vpack.c.b16 %v1016, %v1012
          %v1081 = vpack.c.b16 %v1017, %v1013
          %v1082 = vpack.c.b16 %v1018, %v1014
          %1147 = vmatprep.subr.bf16.mxu0 %v1020
          %1148 = vmatpush1.bf16.msra.mxu0 %v1019
          %1149 = vmatprep.subr.bf16.mxu0 %v1024
          %1150 = vmatpush1.bf16.msra.mxu0 %v1023
          %1151 = vmatprep.subr.bf16.mxu0 %v1028
          %1152 = vmatpush1.bf16.msra.mxu0 %v1027
          %1153 = vmatprep.subr.bf16.mxu0 %v1032
          %1154 = vmatpush1.bf16.msra.mxu0 %v1031
          %1155 = vmatprep.subr.bf16.mxu0 %v1036
          %1156 = vmatpush1.bf16.msra.mxu0 %v1035
          %1157 = vmatprep.subr.bf16.mxu0 %v1040
          %1158 = vmatpush1.bf16.msra.mxu0 %v1039
          %1159 = vmatprep.subr.bf16.mxu0 %v1044
          %1160 = vmatpush1.bf16.msra.mxu0 %v1043
          %1161 = vmatprep.subr.bf16.mxu0 %v1048
          %1162 = vmatpush1.bf16.msra.mxu0 %v1047
          %1163 = vmatprep.subr.bf16.mxu0 %v1052
          %1164 = vmatpush1.bf16.msra.mxu0 %v1051
          %1165 = vmatprep.subr.bf16.mxu0 %v1056
          %1166 = vmatpush1.bf16.msra.mxu0 %v1055
          %1167 = vmatprep.subr.bf16.mxu0 %v1060
          %1168 = vmatpush1.bf16.msra.mxu0 %v1059
          %1169 = vmatprep.subr.bf16.mxu0 %v1064
          %1170 = vmatpush1.bf16.msra.mxu0 %v1063
          %1171 = vmatprep.subr.bf16.mxu0 %v1068
          %1172 = vmatpush1.bf16.msra.mxu0 %v1067
          %1173 = vmatprep.subr.bf16.mxu0 %v1072
          %1174 = vmatpush1.bf16.msra.mxu0 %v1071
          %1175 = vmatprep.subr.bf16.mxu0 %v1076
          %1176 = vmatpush1.bf16.msra.mxu0 %v1075
          %1177 = vmatprep.subr.bf16.mxu0 %v1080
          %1178 = vmatpush1.bf16.msra.mxu0 %v1079
          %1179 = vmatprep.mubr.bf16.mxu0 %v738
          %1180 = vmatmul.mubr.bf16.gmra.mrb[0].mxu0 %v737
          %v1181 = vpop.f32.mrb[0].mxu0
          %v1182 = vadd.f32 %v810, %v1181
          %v1183 = vpop.f32.mrb[0].mxu0
          %v1184 = vadd.f32 %v814, %v1183
          %v1185 = vpop.f32.mrb[0].mxu0
          %v1186 = vadd.f32 %v810, %v1185
          %v1187 = vpop.f32.mrb[0].mxu0
          %v1188 = vadd.f32 %v814, %v1187
          %1189 = vmatprep.mubr.bf16.mxu0 %v740
          %1190 = vmatmul.mubr.bf16.gmra.mrb[0].mxu0 %v739
          %v1191 = vpop.f32.mrb[0].mxu0
          %v1192 = vadd.f32 %v810, %v1191
          %v1193 = vpop.f32.mrb[0].mxu0
          %v1194 = vadd.f32 %v814, %v1193
          %v1195 = vpop.f32.mrb[0].mxu0
          %v1196 = vadd.f32 %v810, %v1195
          %v1197 = vpop.f32.mrb[0].mxu0
          %v1198 = vadd.f32 %v814, %v1197
          %1199 = vdwg.mxu0
          %1200 = vmatprep.subr.bf16.mxu0 %v1022
          %1201 = vmatpush1.bf16.msra.mxu0 %v1021
          %1202 = vmatprep.subr.bf16.mxu0 %v1026
          %1203 = vmatpush1.bf16.msra.mxu0 %v1025
          %1204 = vmatprep.subr.bf16.mxu0 %v1030
          %1205 = vmatpush1.bf16.msra.mxu0 %v1029
          %1206 = vmatprep.subr.bf16.mxu0 %v1034
          %1207 = vmatpush1.bf16.msra.mxu0 %v1033
          %1208 = vmatprep.subr.bf16.mxu0 %v1038
          %1209 = vmatpush1.bf16.msra.mxu0 %v1037
          %1210 = vmatprep.subr.bf16.mxu0 %v1042
          %1211 = vmatpush1.bf16.msra.mxu0 %v1041
          %1212 = vmatprep.subr.bf16.mxu0 %v1046
          %1213 = vmatpush1.bf16.msra.mxu0 %v1045
          %1214 = vmatprep.subr.bf16.mxu0 %v1050
          %1215 = vmatpush1.bf16.msra.mxu0 %v1049
          %1216 = vmatprep.subr.bf16.mxu0 %v1054
          %1217 = vmatpush1.bf16.msra.mxu0 %v1053
          %1218 = vmatprep.subr.bf16.mxu0 %v1058
          %1219 = vmatpush1.bf16.msra.mxu0 %v1057
          %1220 = vmatprep.subr.bf16.mxu0 %v1062
          %1221 = vmatpush1.bf16.msra.mxu0 %v1061
          %1222 = vmatprep.subr.bf16.mxu0 %v1066
          %1223 = vmatpush1.bf16.msra.mxu0 %v1065
          %1224 = vmatprep.subr.bf16.mxu0 %v1070
          %1225 = vmatpush1.bf16.msra.mxu0 %v1069
          %1226 = vmatprep.subr.bf16.mxu0 %v1074
          %1227 = vmatpush1.bf16.msra.mxu0 %v1073
          %1228 = vmatprep.subr.bf16.mxu0 %v1078
          %1229 = vmatpush1.bf16.msra.mxu0 %v1077
          %1230 = vmatprep.subr.bf16.mxu0 %v1082
          %1231 = vmatpush1.bf16.msra.mxu0 %v1081
          %1232 = vmatprep.mubr.bf16.mxu0 %v738
          %1233 = vmatmul.mubr.bf16.gmra.mrb[0].mxu0 %v737
          %v1234 = vpop.f32.mrb[0].mxu0
          %v1235 = vadd.f32 %v818, %v1234
          %v1236 = vpop.f32.mrb[0].mxu0
          %v1237 = vadd.f32 %v822, %v1236
          %v1238 = vpop.f32.mrb[0].mxu0
          %v1239 = vadd.f32 %v818, %v1238
          %v1240 = vpop.f32.mrb[0].mxu0
          %v1241 = vadd.f32 %v822, %v1240
          %1242 = vmatprep.mubr.bf16.mxu0 %v740
          %1243 = vmatmul.mubr.bf16.gmra.mrb[0].mxu0 %v739
          %v1244 = vpop.f32.mrb[0].mxu0
          %v1245 = vadd.f32 %v818, %v1244
          %v1246 = vpop.f32.mrb[0].mxu0
          %v1247 = vadd.f32 %v822, %v1246
          %v1248 = vpop.f32.mrb[0].mxu0
          %v1249 = vadd.f32 %v818, %v1248
          %v1250 = vpop.f32.mrb[0].mxu0
          %v1251 = vadd.f32 %v822, %v1250
          %1252 = vdwg.mxu0
          %p1253 = scmp.eq.s32.totalorder %s34, 0
          // Predicated region
          $region61: #{tpu_custom_call.1} parent=59 // pred_check
            %p1254 = pneg %p1253
          $region62: #{tpu_custom_call.1} parent=59 // pred_check_branch
            %1256 = sbr.rel (%p1254) target = $region64
          $region63: #{tpu_custom_call.1} parent=59 // pred_region
            %1257 = vst [vmem:[#allocation3] sm:$0xff] %v1182
            %1258 = vst [vmem:[#allocation3 + $0x8] sm:$0xff] %v1184
            %1259 = vst [vmem:[#allocation3 + $0x10] sm:$0xff] %v1235
            %1260 = vst [vmem:[#allocation3 + $0x18] sm:$0xff] %v1237
            %1261 = vst [vmem:[#allocation3 + $0x20] sm:$0xff] %v1186
            %1262 = vst [vmem:[#allocation3 + $0x28] sm:$0xff] %v1188
            %1263 = vst [vmem:[#allocation3 + $0x30] sm:$0xff] %v1239
            %1264 = vst [vmem:[#allocation3 + $0x38] sm:$0xff] %v1241
            %1265 = vst [vmem:[#allocation3 + $0x40] sm:$0xff] %v1192
            %1266 = vst [vmem:[#allocation3 + $0x48] sm:$0xff] %v1194
            %1267 = vst [vmem:[#allocation3 + $0x50] sm:$0xff] %v1245
            %1268 = vst [vmem:[#allocation3 + $0x58] sm:$0xff] %v1247
            %1269 = vst [vmem:[#allocation3 + $0x60] sm:$0xff] %v1196
            %1270 = vst [vmem:[#allocation3 + $0x68] sm:$0xff] %v1198
            %1271 = vst [vmem:[#allocation3 + $0x70] sm:$0xff] %v1249
            %1272 = vst [vmem:[#allocation3 + $0x78] sm:$0xff] %v1251
          $region64: #{tpu_custom_call.1} parent=59 // pred_fallthru
            _
          %p1273 = scmp.ne.s32.totalorder %s34, 0
          // Predicated region
          $region65: #{tpu_custom_call.1} parent=59 // pred_check
            %p1274 = pneg %p1273
          $region66: #{tpu_custom_call.1} parent=59 // pred_check_branch
            %1276 = sbr.rel (%p1274) target = $region68
          $region67: #{tpu_custom_call.1} parent=59 // pred_region
            %v1277 = vld [vmem:[#allocation3] sm:$0xff]
            %v1278 = vld [vmem:[#allocation3 + $0x8] sm:$0xff]
            %v1279 = vld [vmem:[#allocation3 + $0x10] sm:$0xff]
            %v1280 = vld [vmem:[#allocation3 + $0x18] sm:$0xff]
            %v1281 = vld [vmem:[#allocation3 + $0x20] sm:$0xff]
            %v1282 = vld [vmem:[#allocation3 + $0x28] sm:$0xff]
            %v1283 = vld [vmem:[#allocation3 + $0x30] sm:$0xff]
            %v1284 = vld [vmem:[#allocation3 + $0x38] sm:$0xff]
            %v1285 = vld [vmem:[#allocation3 + $0x40] sm:$0xff]
            %v1286 = vld [vmem:[#allocation3 + $0x48] sm:$0xff]
            %v1287 = vld [vmem:[#allocation3 + $0x50] sm:$0xff]
            %v1288 = vld [vmem:[#allocation3 + $0x58] sm:$0xff]
            %v1289 = vld [vmem:[#allocation3 + $0x60] sm:$0xff]
            %v1290 = vld [vmem:[#allocation3 + $0x68] sm:$0xff]
            %v1291 = vld [vmem:[#allocation3 + $0x70] sm:$0xff]
            %v1292 = vld [vmem:[#allocation3 + $0x78] sm:$0xff]
            %v1293 = vadd.f32 %v1277, %v1182
            %v1294 = vadd.f32 %v1278, %v1184
            %v1295 = vadd.f32 %v1279, %v1235
            %v1296 = vadd.f32 %v1280, %v1237
            %v1297 = vadd.f32 %v1281, %v1186
            %v1298 = vadd.f32 %v1282, %v1188
            %v1299 = vadd.f32 %v1283, %v1239
            %v1300 = vadd.f32 %v1284, %v1241
            %v1301 = vadd.f32 %v1285, %v1192
            %v1302 = vadd.f32 %v1286, %v1194
            %v1303 = vadd.f32 %v1287, %v1245
            %v1304 = vadd.f32 %v1288, %v1247
            %v1305 = vadd.f32 %v1289, %v1196
            %v1306 = vadd.f32 %v1290, %v1198
            %v1307 = vadd.f32 %v1291, %v1249
            %v1308 = vadd.f32 %v1292, %v1251
            %1309 = vst [vmem:[#allocation3] sm:$0xff] %v1293
            %1310 = vst [vmem:[#allocation3 + $0x8] sm:$0xff] %v1294
            %1311 = vst [vmem:[#allocation3 + $0x10] sm:$0xff] %v1295
            %1312 = vst [vmem:[#allocation3 + $0x18] sm:$0xff] %v1296
            %1313 = vst [vmem:[#allocation3 + $0x20] sm:$0xff] %v1297
            %1314 = vst [vmem:[#allocation3 + $0x28] sm:$0xff] %v1298
            %1315 = vst [vmem:[#allocation3 + $0x30] sm:$0xff] %v1299
            %1316 = vst [vmem:[#allocation3 + $0x38] sm:$0xff] %v1300
            %1317 = vst [vmem:[#allocation3 + $0x40] sm:$0xff] %v1301
            %1318 = vst [vmem:[#allocation3 + $0x48] sm:$0xff] %v1302
            %1319 = vst [vmem:[#allocation3 + $0x50] sm:$0xff] %v1303
            %1320 = vst [vmem:[#allocation3 + $0x58] sm:$0xff] %v1304
            %1321 = vst [vmem:[#allocation3 + $0x60] sm:$0xff] %v1305
            %1322 = vst [vmem:[#allocation3 + $0x68] sm:$0xff] %v1306
            %1323 = vst [vmem:[#allocation3 + $0x70] sm:$0xff] %v1307
            %1324 = vst [vmem:[#allocation3 + $0x78] sm:$0xff] %v1308
          $region68: #{tpu_custom_call.1} parent=59 // pred_fallthru
            _
          %p1325 = scmp.eq.s32.totalorder %s34, 1
          // Predicated region
          $region69: #{tpu_custom_call.1} parent=59 // pred_check
            %p1326 = pneg %p1325
          $region70: #{tpu_custom_call.1} parent=59 // pred_check_branch
            %1328 = sbr.rel (%p1326) target = $region72
          $region71: #{tpu_custom_call.1} parent=59 // pred_region
            %v1329 = vld [vmem:[#allocation3] sm:$0xff]
            %v1330 = vld [vmem:[#allocation3 + $0x8] sm:$0xff]
            %v1331 = vld [vmem:[#allocation3 + $0x10] sm:$0xff]
            %v1332 = vld [vmem:[#allocation3 + $0x18] sm:$0xff]
            %v1333 = vld [vmem:[#allocation3 + $0x20] sm:$0xff]
            %v1334 = vld [vmem:[#allocation3 + $0x28] sm:$0xff]
            %v1335 = vld [vmem:[#allocation3 + $0x30] sm:$0xff]
            %v1336 = vld [vmem:[#allocation3 + $0x38] sm:$0xff]
            %v1337 = vld [vmem:[#allocation3 + $0x40] sm:$0xff]
            %v1338 = vld [vmem:[#allocation3 + $0x48] sm:$0xff]
            %v1339 = vld [vmem:[#allocation3 + $0x50] sm:$0xff]
            %v1340 = vld [vmem:[#allocation3 + $0x58] sm:$0xff]
            %v1341 = vld [vmem:[#allocation3 + $0x60] sm:$0xff]
            %v1342 = vld [vmem:[#allocation3 + $0x68] sm:$0xff]
            %v1343 = vld [vmem:[#allocation3 + $0x70] sm:$0xff]
            %v1344 = vld [vmem:[#allocation3 + $0x78] sm:$0xff]
            %v1345 = vpack.c.bf16 %v1333, %v1329
            %v1346 = vpack.c.bf16 %v1334, %v1330
            %v1347 = vpack.c.bf16 %v1335, %v1331
            %v1348 = vpack.c.bf16 %v1336, %v1332
            %v1349 = vpack.c.bf16 %v1341, %v1337
            %v1350 = vpack.c.bf16 %v1342, %v1338
            %v1351 = vpack.c.bf16 %v1343, %v1339
            %v1352 = vpack.c.bf16 %v1344, %v1340
            %v1361 = vunpack.c.l.b16 %v1345
            %v1362 = vunpack.c.l.b16 %v1346
            %v1363 = vunpack.c.l.b16 %v1347
            %v1364 = vunpack.c.l.b16 %v1348
            %v1365 = vunpack.c.h.b16 %v1345
            %v1366 = vunpack.c.h.b16 %v1346
            %v1367 = vunpack.c.h.b16 %v1347
            %v1368 = vunpack.c.h.b16 %v1348
            %v1369 = vunpack.c.l.b16 %v1349
            %v1370 = vunpack.c.l.b16 %v1350
            %v1371 = vunpack.c.l.b16 %v1351
            %v1372 = vunpack.c.l.b16 %v1352
            %v1373 = vunpack.c.h.b16 %v1349
            %v1374 = vunpack.c.h.b16 %v1350
            %v1375 = vunpack.c.h.b16 %v1351
            %v1376 = vunpack.c.h.b16 %v1352
            %v1377 = vpack.c.b16 %v1362, %v1361
            %v1378 = vpack.c.b16 %v1364, %v1363
            %v1379 = vpack.c.b16 %v1366, %v1365
            %v1380 = vpack.c.b16 %v1368, %v1367
            %v1381 = vpack.c.b16 %v1370, %v1369
            %v1382 = vpack.c.b16 %v1372, %v1371
            %v1383 = vpack.c.b16 %v1374, %v1373
            %v1384 = vpack.c.b16 %v1376, %v1375
            %1393 = vst [vmem:[#allocation12] sm:$0xff] %v1377
            %1394 = vst [vmem:[#allocation12 + $0x8] sm:$0xff] %v1378
            %1395 = vst [vmem:[#allocation12 + $0x10] sm:$0xff] %v1379
            %1396 = vst [vmem:[#allocation12 + $0x18] sm:$0xff] %v1380
            %1397 = vst [vmem:[#allocation12 + $0x20] sm:$0xff] %v1381
            %1398 = vst [vmem:[#allocation12 + $0x28] sm:$0xff] %v1382
            %1399 = vst [vmem:[#allocation12 + $0x30] sm:$0xff] %v1383
            %1400 = vst [vmem:[#allocation12 + $0x38] sm:$0xff] %v1384
          $region72: #{tpu_custom_call.1} parent=59 // pred_fallthru
            _
        $region60: #{tpu_custom_call.1} parent=39 // pred_fallthru
          _
        // Predicated region
        $region73: #{tpu_custom_call.1} parent=39 // pred_check
          %p1401 = pneg %p203
        $region74: #{tpu_custom_call.1} parent=39 // pred_check_branch
          %1403 = sbr.rel (%p1401) target = $region76
        $region75: #{tpu_custom_call.1} parent=39 // pred_region
          %s1404 = smul.u32 4, %s33
          %s1406 = ssub.s32 1024, 1024
          %1407 = vsyncadd [#allocation8], %s1406
          %s1408 = smul.addr %s1404, 4
          %s1409 = smul.addr %s1408, 64
          %s1410 = scalar_lea.hbm %s6, %s1409
          %s1411 = sshll.u32 [#allocation12], 4
          %s1412 = int_to_ptr.vmem [resolvable:$true] %s1411
          %1417 = dma.vmem_to_hbm [thread:$0]  %s1412, 1024, %s1410, [#allocation8], 256, 256, 16
        $region76: #{tpu_custom_call.1} parent=39 // pred_fallthru
          _
        // Predicated region
        $region77: #{tpu_custom_call.1} parent=39 // pred_check
          %p1418 = pneg %p203
        $region78: #{tpu_custom_call.1} parent=39 // pred_check_branch
          %1420 = sbr.rel (%p1418) target = $region80
        $region79: #{tpu_custom_call.1} parent=39 // pred_region
          %1421 = dma.done [#allocation8], 1024
        $region80: #{tpu_custom_call.1} parent=39 // pred_fallthru
          _
      $region40: #{tpu_custom_call.1} parent=5 // pred_fallthru
        _
      %p1422 = scmp.le.s32.totalorder 2, %s23
      // Predicated region
      $region81: #{tpu_custom_call.1} parent=5 // pred_check
        %p1423 = pneg %p1422
      $region82: #{tpu_custom_call.1} parent=5 // pred_check_branch
        %1425 = sbr.rel (%p1423) target = $region84
      $region83: #{tpu_custom_call.1} parent=5 // pred_region
        %s1426 = ssub.s32 %s23, 2
      $region84: #{tpu_custom_call.1} parent=5 // pred_fallthru
        _
    $region6: #{tpu_custom_call.1} parent=1 // loop_footer
      %s27 = sadd.s32 1, %s23
    $region7: #{tpu_custom_call.1} parent=1 // loop_footer_branch
      %22 = sbr.rel target = $region3
    $region8: #{tpu_custom_call.1} parent=1 // loop_exit
      _
    %1427 = vsyncpa [#allocation7], 1
    %s1428 = scalar_lea.sflag [#allocation7], 1
    %1429 = vsyncpa %s1428, 1
    %1430 = vsyncpa [#allocation10], 1
    %s1431 = scalar_lea.sflag [#allocation10], 1
    %1432 = vsyncpa %s1431, 1
    %1433 = vsyncpa [#allocation8], 1
    %s1434 = scalar_lea.sflag [#allocation8], 1
    %1435 = vsyncpa %s1434, 1

</llo_original>
